<compile_context>
chip_gen: v6e
topology: v6e:2x2x1
jax: 0.10.0
libtpu: 0.0.40
codegen_flags: <defaults>
</compile_context>

<pallas_src>
import math

import jax
import jax.numpy as jnp
from jax import lax
from jax.experimental import pallas as pl
from jax.experimental.pallas import tpu as pltpu

_LANE = 128
_SUBLANE = 8


def _round_up(n, m):
    return ((n + m - 1) // m) * m


def _pad_to(a, shape):
    pads = tuple((0, t - s) for s, t in zip(a.shape, shape))
    if any(hi for _, hi in pads):
        a = jnp.pad(a, pads)
    return a


def _cast(a, dt):
    return a if a.dtype == dt else a.astype(dt)


def _cis_kernel(x_ref, ks_ref, vs_ref, mask_ref,
                wq_ref, bq_ref, wk_ref, bk_ref,
                wx_ref, ws_ref, b_out_ref, o_ref):
    """One (batch, L-tile) per grid step. All refs 2-D, lane-dense."""
    x = x_ref[...]     # (TL, C_p)   compute dtype
    ks = ks_ref[...]   # (S_p, C_p)
    vs = vs_ref[...]   # (S_p, C_p)
    mxu_dt = x.dtype

    # Q / K projections (f32 accumulation). 1/sqrt(d_model) is folded into wq/bq.
    q = jnp.dot(x, wq_ref[...], preferred_element_type=jnp.float32) + bq_ref[...]
    k = jnp.dot(ks, wk_ref[...], preferred_element_type=jnp.float32) + bk_ref[...]

    # NT-form contraction (contract last dims) -> no k.T relayout through XLU.
    scores = lax.dot_general(
        q.astype(mxu_dt), k.astype(mxu_dt),
        dimension_numbers=(((1,), (1,)), ((), ())),
        preferred_element_type=jnp.float32)            # (TL, S_p) f32
    # Additive key mask: 0 for real keys, -1e9 for lane-padded key positions.
    scores = scores + mask_ref[...]

    # Numerically stable softmax in f32; reciprocal runs on the EUP slot.
    scores = scores - jnp.max(scores, axis=-1, keepdims=True)
    p = jnp.exp(scores)
    p = p * pl.reciprocal(jnp.sum(p, axis=-1, keepdims=True), approx=True)

    emb = jnp.dot(p.astype(mxu_dt), vs,
                  preferred_element_type=jnp.float32)  # (TL, C_p) f32

    # out = x @ wx + emb @ ws + (bx + bs): two MXU matmuls, one f32 accumulator.
    out = jnp.dot(x, wx_ref[...], preferred_element_type=jnp.float32)
    out = out + jnp.dot(emb.astype(mxu_dt), ws_ref[...],
                        preferred_element_type=jnp.float32)
    out = out + b_out_ref[...]
    o_ref[...] = out.astype(o_ref.dtype)


def cis_forward(x, k_subject, v_subject, params, *,
                compute_dtype=None, max_l_tile=512,
                single_buffer_weights=False):
    """params: dict with wq, bq, wk, bk, wx, bx, ws, bs (weights as (in, out))."""
    B, L, C_in = x.shape
    _, S, _ = k_subject.shape
    d_model = params["wq"].shape[1]
    c_out = params["wx"].shape[1]

    out_dtype = x.dtype
    cdt = jnp.dtype(compute_dtype) if compute_dtype is not None else x.dtype

    # Lane / sublane padding so every MXU operand and VMEM store is dense.
    C_p = _round_up(C_in, _LANE)
    D_p = _round_up(d_model, _LANE)
    O_p = _round_up(c_out, _LANE)
    S_p = _round_up(S, _LANE)                 # lane dim of scores / N dim of Q.K^T
    TL = min(max_l_tile, _round_up(L, _SUBLANE))
    L_p = _round_up(L, TL)

    # Activations: pad only if needed, cast only if needed.
    xp = _cast(_pad_to(x, (B, L_p, C_p)), cdt)
    ksp = _cast(_pad_to(k_subject, (B, S_p, C_p)), cdt)
    vsp = _cast(_pad_to(v_subject, (B, S_p, C_p)), cdt)

    # Precomputed additive key mask row (0 valid, -1e9 padded).
    mask = jnp.where(jnp.arange(S_p) < S, 0.0, -1e9).astype(jnp.float32)
    mask = mask.reshape(1, S_p)

    inv_sqrt_d = 1.0 / math.sqrt(d_model)
    wq = _cast(_pad_to(params["wq"] * inv_sqrt_d, (C_p, D_p)), cdt)
    bq = _pad_to((params["bq"] * inv_sqrt_d).astype(jnp.float32).reshape(1, -1),
                 (1, D_p))
    wk = _cast(_pad_to(params["wk"], (C_p, D_p)), cdt)
    bk = _pad_to(params["bk"].astype(jnp.float32).reshape(1, -1), (1, D_p))
    wx = _cast(_pad_to(params["wx"], (C_p, O_p)), cdt)
    ws = _cast(_pad_to(params["ws"], (C_p, O_p)), cdt)
    b_out = _pad_to((params["bx"] + params["bs"]).astype(jnp.float32).reshape(1, -1),
                    (1, O_p))

    grid = (B, L_p // TL)

    def batched(rows, cols):
        return pl.BlockSpec((None, rows, cols), lambda b, l: (b, l, 0))

    def per_batch(rows, cols):       # constant over the L-tile axis
        return pl.BlockSpec((None, rows, cols), lambda b, l: (b, 0, 0))

    def shared(shape):               # constant over the whole grid
        if single_buffer_weights:
            return pl.BlockSpec(shape, lambda b, l: (0, 0),
                                pipeline_mode=pl.Buffered(1))
        return pl.BlockSpec(shape, lambda b, l: (0, 0))

    # Derive a VMEM budget from the actual tiles (double-buffered activations,
    # weights, f32 live temps) and clamp so it is safe on v7x's 64 MiB.
    cd_sz = jnp.dtype(cdt).itemsize
    out_sz = jnp.dtype(out_dtype).itemsize
    w_bufs = 1 if single_buffer_weights else 2
    vmem_est = (
        2 * TL * C_p * cd_sz                               # x tile
        + 2 * TL * O_p * out_sz                            # out tile
        + 2 * 2 * S_p * C_p * cd_sz                        # K, V tiles
        + w_bufs * (2 * C_p * D_p + 2 * C_p * O_p) * cd_sz  # wq, wk, wx, ws
        + 4 * (2 * TL * S_p + TL * D_p + S_p * D_p + TL * C_p + TL * O_p))  # f32 temps
    vmem_limit = int(min(max(vmem_est * 1.25, 32 * 1024 * 1024),
                         64 * 1024 * 1024))

    flops = 2 * B * (L_p * C_p * D_p + S_p * C_p * D_p + L_p * S_p * D_p
                     + L_p * S_p * C_p + 2 * L_p * C_p * O_p)
    bytes_accessed = (
        (xp.size + ksp.size + vsp.size
         + wq.size + wk.size + wx.size + ws.size) * cd_sz
        + (mask.size + bq.size + bk.size + b_out.size) * 4
        + B * L_p * O_p * out_sz)

    out = pl.pallas_call(
        _cis_kernel,
        out_shape=jax.ShapeDtypeStruct((B, L_p, O_p), out_dtype),
        grid_spec=pltpu.PrefetchScalarGridSpec(
            num_scalar_prefetch=0,
            grid=grid,
            in_specs=[
                batched(TL, C_p),          # x
                per_batch(S_p, C_p),       # K_subject
                per_batch(S_p, C_p),       # V_subject
                shared((1, S_p)),          # additive key mask
                shared((C_p, D_p)),        # wq  (1/sqrt(d) folded in)
                shared((1, D_p)),          # bq  (1/sqrt(d) folded in)
                shared((C_p, D_p)),        # wk
                shared((1, D_p)),          # bk
                shared((C_p, O_p)),        # wx
                shared((C_p, O_p)),        # ws
                shared((1, O_p)),          # bx + bs
            ],
            out_specs=batched(TL, O_p),
        ),
        compiler_params=pltpu.CompilerParams(
            dimension_semantics=("parallel", "parallel"),
            vmem_limit_bytes=vmem_limit),
        cost_estimate=pl.CostEstimate(
            flops=flops,
            transcendentals=B * L_p * S_p,
            bytes_accessed=bytes_accessed),
    )(xp, ksp, vsp, mask, wq, bq, wk, bk, wx, ws, b_out)

    # Strip the lane / sublane padding.
    return out[:, :L, :c_out]


def cis_reference(x, k_subject, v_subject, params):
    """Pure-JAX reference mirroring the PyTorch forward."""
    d_model = params["wq"].shape[1]
    K = k_subject @ params["wk"] + params["bk"]
    Q = x @ params["wq"] + params["bq"]
    scores = jnp.einsum("bld,bsd->bls", Q, K) / math.sqrt(d_model)
    p = jax.nn.softmax(scores, axis=-1)
    emb = jnp.einsum("bls,bsc->blc", p, v_subject)
    return (x @ params["wx"] + params["bx"]) + (emb @ params["ws"] + params["bs"])


def init_params(key, c_in, d_model, c_out, dtype=jnp.float32):
    ks = jax.random.split(key, 8)

    def lin(kw, kb, fan_in, fan_out):
        bound = 1.0 / math.sqrt(fan_in)
        w = jax.random.uniform(kw, (fan_in, fan_out), dtype, -bound, bound)
        b = jax.random.uniform(kb, (fan_out,), dtype, -bound, bound)
        return w, b

    wq, bq = lin(ks[0], ks[1], c_in, d_model)
    wk, bk = lin(ks[2], ks[3], c_in, d_model)
    wx, bx = lin(ks[4], ks[5], c_in, c_out)
    ws, bs = lin(ks[6], ks[7], c_in, c_out)
    return dict(wq=wq, bq=bq, wk=wk, bk=bk, wx=wx, bx=bx, ws=ws, bs=bs)


if __name__ == "__main__":
    B, L, S = 2, 8, 8
    C_in, d_model, C_out = 4, 32, 4

    key = jax.random.PRNGKey(0)
    kx, kk, kv, kp = jax.random.split(key, 4)
    x = jax.random.normal(kx, (B, L, C_in), jnp.float32)
    k_subject = jax.random.normal(kk, (B, S, C_in), jnp.float32)
    v_subject = jax.random.normal(kv, (B, S, C_in), jnp.float32)
    params = init_params(kp, C_in, d_model, C_out)

    ref = cis_reference(x, k_subject, v_subject, params)

    # f32 path (default compute dtype).
    out = jax.block_until_ready(cis_forward(x, k_subject, v_subject, params))
    assert out.shape == (B, L, C_out)
    # Tolerance absorbs the EUP approximate reciprocal in the softmax denominator.
    assert jnp.allclose(out, ref, atol=1e-2, rtol=1e-2), (
        "f32 mismatch vs reference, max abs err = %e"
        % float(jnp.max(jnp.abs(out - ref))))

    # bf16 MXU-operand path (f32 accumulation + f32 softmax), loose tolerance.
    out_bf16 = jax.block_until_ready(
        cis_forward(x, k_subject, v_subject, params,
                    compute_dtype=jnp.bfloat16))
    assert out_bf16.shape == (B, L, C_out)
    assert bool(jnp.all(jnp.isfinite(out_bf16)))
    assert jnp.allclose(out_bf16, ref, atol=1e-1, rtol=1e-1), (
        "bf16 mismatch vs reference, max abs err = %e"
        % float(jnp.max(jnp.abs(out_bf16 - ref))))

    print("KERNEL_OK")
</pallas_src>

<mosaic_0001>
module attributes {stable_mosaic.version = 11 : i64} {
  func.func @_cis_kernel(%arg0: i32, %arg1: i32, %arg2: memref<1x8x128xf32, #tpu.memory_space<vmem>>, %arg3: memref<1x128x128xf32, #tpu.memory_space<vmem>>, %arg4: memref<1x128x128xf32, #tpu.memory_space<vmem>>, %arg5: memref<1x128xf32, #tpu.memory_space<vmem>>, %arg6: memref<128x128xf32, #tpu.memory_space<vmem>>, %arg7: memref<1x128xf32, #tpu.memory_space<vmem>>, %arg8: memref<128x128xf32, #tpu.memory_space<vmem>>, %arg9: memref<1x128xf32, #tpu.memory_space<vmem>>, %arg10: memref<128x128xf32, #tpu.memory_space<vmem>>, %arg11: memref<128x128xf32, #tpu.memory_space<vmem>>, %arg12: memref<1x128xf32, #tpu.memory_space<vmem>>, %arg13: memref<1x8x128xf32, #tpu.memory_space<vmem>>) attributes {dimension_semantics = [#tpu.dimension_semantics<parallel>, #tpu.dimension_semantics<parallel>], iteration_bounds = array<i64: 2, 1>, scalar_prefetch = 0 : i64, scratch_operands = 0 : i64, tpu.core_type = #tpu.core_type<tc>, window_params = [{transform_indices = @transform_0, window_bounds = array<i64: 1, 8, 128>}, {transform_indices = @transform_1, window_bounds = array<i64: 1, 128, 128>}, {transform_indices = @transform_2, window_bounds = array<i64: 1, 128, 128>}, {pipeline_mode = #tpu.pipeline_mode<synchronous>, transform_indices = @transform_3, window_bounds = array<i64: 1, 128>}, {pipeline_mode = #tpu.pipeline_mode<synchronous>, transform_indices = @transform_4, window_bounds = array<i64: 128, 128>}, {pipeline_mode = #tpu.pipeline_mode<synchronous>, transform_indices = @transform_5, window_bounds = array<i64: 1, 128>}, {pipeline_mode = #tpu.pipeline_mode<synchronous>, transform_indices = @transform_6, window_bounds = array<i64: 128, 128>}, {pipeline_mode = #tpu.pipeline_mode<synchronous>, transform_indices = @transform_7, window_bounds = array<i64: 1, 128>}, {pipeline_mode = #tpu.pipeline_mode<synchronous>, transform_indices = @transform_8, window_bounds = array<i64: 128, 128>}, {pipeline_mode = #tpu.pipeline_mode<synchronous>, transform_indices = @transform_9, window_bounds = array<i64: 128, 128>}, {pipeline_mode = #tpu.pipeline_mode<synchronous>, transform_indices = @transform_10, window_bounds = array<i64: 1, 128>}, {transform_indices = @transform_11, window_bounds = array<i64: 1, 8, 128>}]} {
    %c0 = arith.constant 0 : index
    %c0_0 = arith.constant 0 : index
    %c0_1 = arith.constant 0 : index
    %0 = vector.load %arg2[%c0, %c0_0, %c0_1] : memref<1x8x128xf32, #tpu.memory_space<vmem>>, vector<1x8x128xf32>
    %1 = vector.shape_cast %0 : vector<1x8x128xf32> to vector<8x128xf32>
    %c0_2 = arith.constant 0 : index
    %c0_3 = arith.constant 0 : index
    %c0_4 = arith.constant 0 : index
    %2 = vector.load %arg3[%c0_2, %c0_3, %c0_4] : memref<1x128x128xf32, #tpu.memory_space<vmem>>, vector<1x128x128xf32>
    %3 = vector.shape_cast %2 : vector<1x128x128xf32> to vector<128x128xf32>
    %c0_5 = arith.constant 0 : index
    %c0_6 = arith.constant 0 : index
    %c0_7 = arith.constant 0 : index
    %4 = vector.load %arg4[%c0_5, %c0_6, %c0_7] : memref<1x128x128xf32, #tpu.memory_space<vmem>>, vector<1x128x128xf32>
    %5 = vector.shape_cast %4 : vector<1x128x128xf32> to vector<128x128xf32>
    %c0_8 = arith.constant 0 : index
    %c0_9 = arith.constant 0 : index
    %6 = vector.load %arg6[%c0_8, %c0_9] : memref<128x128xf32, #tpu.memory_space<vmem>>, vector<128x128xf32>
    %cst = arith.constant dense<0.000000e+00> : vector<8x128xf32>
    %7 = tpu.matmul %1, %6, %cst {dimension_numbers = #tpu.dot_dimension_numbers<[1], [0], [0], [1], [0, 0, 1, 1], [], []>} : vector<8x128xf32>, vector<128x128xf32>, vector<8x128xf32> -> vector<8x128xf32>
    %c0_10 = arith.constant 0 : index
    %c0_11 = arith.constant 0 : index
    %8 = vector.load %arg7[%c0_10, %c0_11] : memref<1x128xf32, #tpu.memory_space<vmem>>, vector<1x128xf32>
    %9 = vector.broadcast %8 : vector<1x128xf32> to vector<8x128xf32>
    %10 = arith.addf %7, %9 : vector<8x128xf32>
    %c0_12 = arith.constant 0 : index
    %c0_13 = arith.constant 0 : index
    %11 = vector.load %arg8[%c0_12, %c0_13] : memref<128x128xf32, #tpu.memory_space<vmem>>, vector<128x128xf32>
    %cst_14 = arith.constant dense<0.000000e+00> : vector<128x128xf32>
    %12 = tpu.matmul %3, %11, %cst_14 {dimension_numbers = #tpu.dot_dimension_numbers<[1], [0], [0], [1], [0, 0, 1, 1], [], []>} : vector<128x128xf32>, vector<128x128xf32>, vector<128x128xf32> -> vector<128x128xf32>
    %c0_15 = arith.constant 0 : index
    %c0_16 = arith.constant 0 : index
    %13 = vector.load %arg9[%c0_15, %c0_16] : memref<1x128xf32, #tpu.memory_space<vmem>>, vector<1x128xf32>
    %14 = vector.broadcast %13 : vector<1x128xf32> to vector<128x128xf32>
    %15 = arith.addf %12, %14 : vector<128x128xf32>
    %cst_17 = arith.constant dense<0.000000e+00> : vector<8x128xf32>
    %16 = tpu.matmul %10, %15, %cst_17 {dimension_numbers = #tpu.dot_dimension_numbers<[1], [1], [0], [0], [0, 0, 1, 0], [], []>} : vector<8x128xf32>, vector<128x128xf32>, vector<8x128xf32> -> vector<8x128xf32>
    %c0_18 = arith.constant 0 : index
    %c0_19 = arith.constant 0 : index
    %17 = vector.load %arg5[%c0_18, %c0_19] : memref<1x128xf32, #tpu.memory_space<vmem>>, vector<1x128xf32>
    %18 = vector.broadcast %17 : vector<1x128xf32> to vector<8x128xf32>
    %19 = arith.addf %16, %18 : vector<8x128xf32>
    %cst_20 = arith.constant dense<0xFF800000> : vector<8xf32>
    %20 = vector.multi_reduction <maximumf>, %19, %cst_20 [1] : vector<8x128xf32> to vector<8xf32>
    %21 = vector.shape_cast %20 : vector<8xf32> to vector<8x1xf32>
    %22 = vector.broadcast %21 : vector<8x1xf32> to vector<8x128xf32>
    %23 = arith.subf %19, %22 : vector<8x128xf32>
    %24 = math.exp %23 : vector<8x128xf32>
    %cst_21 = arith.constant dense<0.000000e+00> : vector<8xf32>
    %25 = vector.multi_reduction <add>, %24, %cst_21 [1] : vector<8x128xf32> to vector<8xf32>
    %26 = vector.shape_cast %25 : vector<8xf32> to vector<8x1xf32>
    %27 = tpu.reciprocal %26 {approx = true} : vector<8x1xf32> -> vector<8x1xf32>
    %28 = vector.broadcast %27 : vector<8x1xf32> to vector<8x128xf32>
    %29 = arith.mulf %24, %28 : vector<8x128xf32>
    %cst_22 = arith.constant dense<0.000000e+00> : vector<8x128xf32>
    %30 = tpu.matmul %29, %5, %cst_22 {dimension_numbers = #tpu.dot_dimension_numbers<[1], [0], [0], [1], [0, 0, 1, 1], [], []>} : vector<8x128xf32>, vector<128x128xf32>, vector<8x128xf32> -> vector<8x128xf32>
    %c0_23 = arith.constant 0 : index
    %c0_24 = arith.constant 0 : index
    %31 = vector.load %arg10[%c0_23, %c0_24] : memref<128x128xf32, #tpu.memory_space<vmem>>, vector<128x128xf32>
    %cst_25 = arith.constant dense<0.000000e+00> : vector<8x128xf32>
    %32 = tpu.matmul %1, %31, %cst_25 {dimension_numbers = #tpu.dot_dimension_numbers<[1], [0], [0], [1], [0, 0, 1, 1], [], []>} : vector<8x128xf32>, vector<128x128xf32>, vector<8x128xf32> -> vector<8x128xf32>
    %c0_26 = arith.constant 0 : index
    %c0_27 = arith.constant 0 : index
    %33 = vector.load %arg11[%c0_26, %c0_27] : memref<128x128xf32, #tpu.memory_space<vmem>>, vector<128x128xf32>
    %cst_28 = arith.constant dense<0.000000e+00> : vector<8x128xf32>
    %34 = tpu.matmul %30, %33, %cst_28 {dimension_numbers = #tpu.dot_dimension_numbers<[1], [0], [0], [1], [0, 0, 1, 1], [], []>} : vector<8x128xf32>, vector<128x128xf32>, vector<8x128xf32> -> vector<8x128xf32>
    %35 = arith.addf %32, %34 : vector<8x128xf32>
    %c0_29 = arith.constant 0 : index
    %c0_30 = arith.constant 0 : index
    %36 = vector.load %arg12[%c0_29, %c0_30] : memref<1x128xf32, #tpu.memory_space<vmem>>, vector<1x128xf32>
    %37 = vector.broadcast %36 : vector<1x128xf32> to vector<8x128xf32>
    %38 = arith.addf %35, %37 : vector<8x128xf32>
    %c0_31 = arith.constant 0 : index
    %c0_32 = arith.constant 0 : index
    %c0_33 = arith.constant 0 : index
    %39 = vector.load %arg13[%c0_31, %c0_32, %c0_33] : memref<1x8x128xf32, #tpu.memory_space<vmem>>, vector<1x8x128xf32>
    %40 = vector.shape_cast %39 : vector<1x8x128xf32> to vector<8x128xf32>
    %41 = vector.shape_cast %38 : vector<8x128xf32> to vector<1x8x128xf32>
    tpu.vector_store %arg13[%c0_31, %c0_32, %c0_33], %41 {strides = array<i32>} : memref<1x8x128xf32, #tpu.memory_space<vmem>>, vector<1x8x128xf32>,
    return
  }
  func.func @transform_0(%arg0: i32, %arg1: i32) -> (i32, i32, i32) {
    %c0_i32 = arith.constant 0 : i32
    %c0_i32_0 = arith.constant 0 : i32
    return %arg0, %arg1, %c0_i32 : i32, i32, i32
  }
  func.func @transform_1(%arg0: i32, %arg1: i32) -> (i32, i32, i32) {
    %c0_i32 = arith.constant 0 : i32
    %c0_i32_0 = arith.constant 0 : i32
    %c0_i32_1 = arith.constant 0 : i32
    return %arg0, %c0_i32, %c0_i32_0 : i32, i32, i32
  }
  func.func @transform_2(%arg0: i32, %arg1: i32) -> (i32, i32, i32) {
    %c0_i32 = arith.constant 0 : i32
    %c0_i32_0 = arith.constant 0 : i32
    %c0_i32_1 = arith.constant 0 : i32
    return %arg0, %c0_i32, %c0_i32_0 : i32, i32, i32
  }
  func.func @transform_3(%arg0: i32, %arg1: i32) -> (i32, i32) {
    %c0_i32 = arith.constant 0 : i32
    %c0_i32_0 = arith.constant 0 : i32
    %c0_i32_1 = arith.constant 0 : i32
    return %c0_i32, %c0_i32_0 : i32, i32
  }
  func.func @transform_4(%arg0: i32, %arg1: i32) -> (i32, i32) {
    %c0_i32 = arith.constant 0 : i32
    %c0_i32_0 = arith.constant 0 : i32
    %c0_i32_1 = arith.constant 0 : i32
    return %c0_i32, %c0_i32_0 : i32, i32
  }
  func.func @transform_5(%arg0: i32, %arg1: i32) -> (i32, i32) {
    %c0_i32 = arith.constant 0 : i32
    %c0_i32_0 = arith.constant 0 : i32
    %c0_i32_1 = arith.constant 0 : i32
    return %c0_i32, %c0_i32_0 : i32, i32
  }
  func.func @transform_6(%arg0: i32, %arg1: i32) -> (i32, i32) {
    %c0_i32 = arith.constant 0 : i32
    %c0_i32_0 = arith.constant 0 : i32
    %c0_i32_1 = arith.constant 0 : i32
    return %c0_i32, %c0_i32_0 : i32, i32
  }
  func.func @transform_7(%arg0: i32, %arg1: i32) -> (i32, i32) {
    %c0_i32 = arith.constant 0 : i32
    %c0_i32_0 = arith.constant 0 : i32
    %c0_i32_1 = arith.constant 0 : i32
    return %c0_i32, %c0_i32_0 : i32, i32
  }
  func.func @transform_8(%arg0: i32, %arg1: i32) -> (i32, i32) {
    %c0_i32 = arith.constant 0 : i32
    %c0_i32_0 = arith.constant 0 : i32
    %c0_i32_1 = arith.constant 0 : i32
    return %c0_i32, %c0_i32_0 : i32, i32
  }
  func.func @transform_9(%arg0: i32, %arg1: i32) -> (i32, i32) {
    %c0_i32 = arith.constant 0 : i32
    %c0_i32_0 = arith.constant 0 : i32
    %c0_i32_1 = arith.constant 0 : i32
    return %c0_i32, %c0_i32_0 : i32, i32
  }
  func.func @transform_10(%arg0: i32, %arg1: i32) -> (i32, i32) {
    %c0_i32 = arith.constant 0 : i32
    %c0_i32_0 = arith.constant 0 : i32
    %c0_i32_1 = arith.constant 0 : i32
    return %c0_i32, %c0_i32_0 : i32, i32
  }
  func.func @transform_11(%arg0: i32, %arg1: i32) -> (i32, i32, i32) {
    %c0_i32 = arith.constant 0 : i32
    %c0_i32_0 = arith.constant 0 : i32
    return %arg0, %arg1, %c0_i32 : i32, i32, i32
  }
}

</mosaic_0001>

<llo_original>
// kernel: tpu_custom_call.1
$region0: #{tpu_custom_call.1}
  #allocation0 [shape = 'u32[]', space=smem, size = 0x4, offset = 0x4, fixed_abs, tag = 'smem constant byte address 0x4 - core index']
  #allocation1 [shape = 'u32[144,128]{1,0:T(1,128)}', space=vmem, size = 0x12000, scoped, tag = 'internal scratch']
  %s0 = inlined_call_operand.hbm [shape: f32[2,8,128], index: 0, kind: input, shape index: {}]
  %s1 = inlined_call_operand.hbm [shape: f32[2,128,128], index: 1, kind: input, shape index: {}]
  %s2 = inlined_call_operand.hbm [shape: f32[2,128,128], index: 2, kind: input, shape index: {}]
  %s3 = inlined_call_operand.vmem [shape: f32[1,128], index: 3, kind: input, shape index: {}]
  %s4 = inlined_call_operand.hbm [shape: f32[128,128], index: 4, kind: input, shape index: {}]
  %s5 = inlined_call_operand.vmem [shape: f32[1,128], index: 5, kind: input, shape index: {}]
  %s6 = inlined_call_operand.hbm [shape: f32[128,128], index: 6, kind: input, shape index: {}]
  %s7 = inlined_call_operand.vmem [shape: f32[1,128], index: 7, kind: input, shape index: {}]
  %s8 = inlined_call_operand.hbm [shape: f32[128,128], index: 8, kind: input, shape index: {}]
  %s9 = inlined_call_operand.hbm [shape: f32[128,128], index: 9, kind: input, shape index: {}]
  %s10 = inlined_call_operand.vmem [shape: f32[1,128], index: 10, kind: input, shape index: {}]
  %s11 = inlined_call_operand.hbm [shape: f32[2,8,128], index: 11, kind: output, shape index: {}]
  %s12 = sld [smem:[#allocation0]]
  $region105: #{tpu_custom_call.1} parent=0
    _
  %s14 = ssub.s32 1, %s12
  %s15 = scalar_select 0, %s14, %s12
  $region1: #{tpu_custom_call.1} parent=0
    #allocation2 [shape = 'u8[8192]{0}', space=vmem, size = 0x2000, scoped, tag = 'input window, operand 0']
    #allocation3 [shape = 's32[2]{0}', space=sflag, size = 0x8, scoped, tag = 'scoped memory for tpu_custom_call.1']
    #allocation4 [shape = 's32[2]{0}', space=sflag, size = 0x8, scoped, tag = 'scoped memory for tpu_custom_call.1']
    #allocation5 [shape = 'u8[131072]{0}', space=vmem, size = 0x20000, scoped, tag = 'input window, operand 1']
    #allocation6 [shape = 's32[2]{0}', space=sflag, size = 0x8, scoped, tag = 'scoped memory for tpu_custom_call.1']
    #allocation7 [shape = 'u8[131072]{0}', space=vmem, size = 0x20000, scoped, tag = 'input window, operand 2']
    #allocation8 [shape = 'u8[65536]{0}', space=vmem, size = 0x10000, scoped, tag = 'input window, operand 4, single buffered']
    #allocation9 [shape = 's32[1]{0}', space=sflag, size = 0x4, scoped, tag = 'scoped memory for tpu_custom_call.1']
    #allocation10 [shape = 'u8[65536]{0}', space=vmem, size = 0x10000, scoped, tag = 'input window, operand 6, single buffered']
    #allocation11 [shape = 'u8[65536]{0}', space=vmem, size = 0x10000, scoped, tag = 'input window, operand 8, single buffered']
    #allocation12 [shape = 's32[1]{0}', space=sflag, size = 0x4, scoped, tag = 'scoped memory for tpu_custom_call.1']
    #allocation13 [shape = 'u8[65536]{0}', space=vmem, size = 0x10000, scoped, tag = 'input window, operand 9, single buffered']
    #allocation14 [shape = 'u8[8192]{0}', space=vmem, size = 0x2000, scoped, tag = 'output window, operand 0']
    %16 = vsyncpa [#allocation3], 0
    %s17 = scalar_lea.sflag [#allocation3], 1
    %18 = vsyncpa %s17, 0
    %19 = vsyncpa [#allocation6], 0
    %s20 = scalar_lea.sflag [#allocation6], 1
    %21 = vsyncpa %s20, 0
    %22 = vsyncpa [#allocation9], 0
    %23 = vsyncpa [#allocation12], 0
    %24 = vsyncpa [#allocation4], 0
    %s25 = scalar_lea.sflag [#allocation4], 1
    %26 = vsyncpa %s25, 0
    loop: start=0, step=1, limit=4
    $region2: #{tpu_custom_call.1} parent=1 // loop_pre_header
      _
    $region3: #{tpu_custom_call.1} parent=1 // loop_header
      %s28 = sphi 0, %s32
      %p29 = scmp.ge.s32.totalorder %s28, 4
      %s35 = sphi 0, %s47
      %s36 = sphi 0, %s43
      %s37 = sphi 0, %s35
      %s38 = sphi 0, %s36
      %s39 = sphi 0, %s37
      %s40 = sphi 0, %s38
      %s52 = sphi 0, %s54
      %s55 = sphi 0, %s52
      %s56 = sphi 0, %s55
      %s72 = sphi 0, %s56
      %s78 = sphi 0, %s80
      %s81 = sphi 0, %s78
      %s82 = sphi 0, %s81
      %s98 = sphi 0, %s82
      %s104 = sphi 0, %s106
      %s107 = sphi 0, %s104
      %s108 = sphi 0, %s107
      %s124 = sphi 0, %s108
      %s128 = sphi 0, %s128
      %s130 = sphi 0, %s128
      %s131 = sphi 0, %s130
      %s145 = sphi 0, %s131
      %s149 = sphi 0, %s149
      %s151 = sphi 0, %s149
      %s152 = sphi 0, %s151
      %s166 = sphi 0, %s152
      %s170 = sphi 0, %s170
      %s172 = sphi 0, %s170
      %s173 = sphi 0, %s172
      %s187 = sphi 0, %s173
      %s191 = sphi 0, %s191
      %s193 = sphi 0, %s191
      %s194 = sphi 0, %s193
      %s208 = sphi 0, %s194
      %s212 = sphi 0, %s212
      %s214 = sphi 0, %s212
      %s215 = sphi 0, %s214
      %s229 = sphi 0, %s215
      %s233 = sphi 0, %s233
      %s235 = sphi 0, %s233
      %s236 = sphi 0, %s235
      %s250 = sphi 0, %s236
      %s254 = sphi 0, %s254
      %s256 = sphi 0, %s254
      %s257 = sphi 0, %s256
      %s271 = sphi 0, %s257
      %s275 = sphi 0, %s275
      %s277 = sphi 0, %s275
      %s278 = sphi 0, %s277
      %s292 = sphi 0, %s278
      %s300 = sphi 0, %s302
      %s303 = sphi 0, %s300
      %s304 = sphi 0, %s303
      %s320 = sphi 0, %s304
    $region4: #{tpu_custom_call.1} parent=1 // loop_header_branch
      %31 = sbr.rel (%p29) target = $region8
    $region5: #{tpu_custom_call.1} parent=1 // loop_body
      %s33 = ssub.s32 %s28, 1
      %s34 = ssub.s32 %s28, 2
      %s41 = sadd.s32 1, %s36
      %p42 = scmp.ge.s32.totalorder %s41, 1
      %s43 = scalar_select %p42, 0, %s41
      %s44 = sadd.s32 1, %s35
      %s45 = scalar_select %p42, %s44, %s35
      %p46 = scmp.ge.s32.totalorder %s45, 2
      %s47 = scalar_select %p46, 0, %s45
      %s48 = ssub.s32 %s35, %s47
      %s49 = ssub.s32 %s36, %s43
      %s50 = sor.u32 %s48, %s49
      %p51 = scmp.eq.s32.totalorder %s50, 0
      %s53 = sadd.s32 %s52, 1
      %s54 = scalar_select %p51, %s52, %s53
      %p57 = pneg %p51
      %p58 = scmp.eq.s32.totalorder %s28, 1
      %p59 = por %p57, %p58
      %p60 = scmp.ne.s32.totalorder %s52, %s55
      %p61 = scmp.eq.s32.totalorder %s28, 0
      %p62 = por %p60, %p61
      %p63 = scmp.ne.s32.totalorder %s52, %s55
      %p64 = scmp.eq.s32.totalorder %s33, 1
      %p65 = por %p63, %p64
      %p66 = scmp.ne.s32.totalorder %s55, %s56
      %p67 = scmp.eq.s32.totalorder %s33, 0
      %p68 = por %p66, %p67
      %p69 = scmp.ne.s32.totalorder %s55, %s56
      %p70 = scmp.eq.s32.totalorder %s34, 1
      %p71 = por %p69, %p70
      %p73 = scmp.ne.s32.totalorder %s56, %s72
      %p74 = scmp.eq.s32.totalorder %s34, 0
      %p75 = por %p73, %p74
      %s76 = ssub.s32 %s35, %s47
      %p77 = scmp.eq.s32.totalorder %s76, 0
      %s79 = sadd.s32 %s78, 1
      %s80 = scalar_select %p77, %s78, %s79
      %p83 = pneg %p77
      %p84 = scmp.eq.s32.totalorder %s28, 1
      %p85 = por %p83, %p84
      %p86 = scmp.ne.s32.totalorder %s78, %s81
      %p87 = scmp.eq.s32.totalorder %s28, 0
      %p88 = por %p86, %p87
      %p89 = scmp.ne.s32.totalorder %s78, %s81
      %p90 = scmp.eq.s32.totalorder %s33, 1
      %p91 = por %p89, %p90
      %p92 = scmp.ne.s32.totalorder %s81, %s82
      %p93 = scmp.eq.s32.totalorder %s33, 0
      %p94 = por %p92, %p93
      %p95 = scmp.ne.s32.totalorder %s81, %s82
      %p96 = scmp.eq.s32.totalorder %s34, 1
      %p97 = por %p95, %p96
      %p99 = scmp.ne.s32.totalorder %s82, %s98
      %p100 = scmp.eq.s32.totalorder %s34, 0
      %p101 = por %p99, %p100
      %s102 = ssub.s32 %s35, %s47
      %p103 = scmp.eq.s32.totalorder %s102, 0
      %s105 = sadd.s32 %s104, 1
      %s106 = scalar_select %p103, %s104, %s105
      %p109 = pneg %p103
      %p110 = scmp.eq.s32.totalorder %s28, 1
      %p111 = por %p109, %p110
      %p112 = scmp.ne.s32.totalorder %s104, %s107
      %p113 = scmp.eq.s32.totalorder %s28, 0
      %p114 = por %p112, %p113
      %p115 = scmp.ne.s32.totalorder %s104, %s107
      %p116 = scmp.eq.s32.totalorder %s33, 1
      %p117 = por %p115, %p116
      %p118 = scmp.ne.s32.totalorder %s107, %s108
      %p119 = scmp.eq.s32.totalorder %s33, 0
      %p120 = por %p118, %p119
      %p121 = scmp.ne.s32.totalorder %s107, %s108
      %p122 = scmp.eq.s32.totalorder %s34, 1
      %p123 = por %p121, %p122
      %p125 = scmp.ne.s32.totalorder %s108, %s124
      %p126 = scmp.eq.s32.totalorder %s34, 0
      %p127 = por %p125, %p126
      %s129 = sadd.s32 %s128, 1
      %p132 = scmp.eq.s32.totalorder %s28, 1
      %p133 = scmp.ne.s32.totalorder %s128, %s130
      %p134 = scmp.eq.s32.totalorder %s28, 0
      %p135 = por %p133, %p134
      %p136 = scmp.ne.s32.totalorder %s128, %s130
      %p137 = scmp.eq.s32.totalorder %s33, 1
      %p138 = por %p136, %p137
      %p139 = scmp.ne.s32.totalorder %s130, %s131
      %p140 = scmp.eq.s32.totalorder %s33, 0
      %p141 = por %p139, %p140
      %p142 = scmp.ne.s32.totalorder %s130, %s131
      %p143 = scmp.eq.s32.totalorder %s34, 1
      %p144 = por %p142, %p143
      %p146 = scmp.ne.s32.totalorder %s131, %s145
      %p147 = scmp.eq.s32.totalorder %s34, 0
      %p148 = por %p146, %p147
      %s150 = sadd.s32 %s149, 1
      %p153 = scmp.eq.s32.totalorder %s28, 1
      %p154 = scmp.ne.s32.totalorder %s149, %s151
      %p155 = scmp.eq.s32.totalorder %s28, 0
      %p156 = por %p154, %p155
      %p157 = scmp.ne.s32.totalorder %s149, %s151
      %p158 = scmp.eq.s32.totalorder %s33, 1
      %p159 = por %p157, %p158
      %p160 = scmp.ne.s32.totalorder %s151, %s152
      %p161 = scmp.eq.s32.totalorder %s33, 0
      %p162 = por %p160, %p161
      %p163 = scmp.ne.s32.totalorder %s151, %s152
      %p164 = scmp.eq.s32.totalorder %s34, 1
      %p165 = por %p163, %p164
      %p167 = scmp.ne.s32.totalorder %s152, %s166
      %p168 = scmp.eq.s32.totalorder %s34, 0
      %p169 = por %p167, %p168
      %s171 = sadd.s32 %s170, 1
      %p174 = scmp.eq.s32.totalorder %s28, 1
      %p175 = scmp.ne.s32.totalorder %s170, %s172
      %p176 = scmp.eq.s32.totalorder %s28, 0
      %p177 = por %p175, %p176
      %p178 = scmp.ne.s32.totalorder %s170, %s172
      %p179 = scmp.eq.s32.totalorder %s33, 1
      %p180 = por %p178, %p179
      %p181 = scmp.ne.s32.totalorder %s172, %s173
      %p182 = scmp.eq.s32.totalorder %s33, 0
      %p183 = por %p181, %p182
      %p184 = scmp.ne.s32.totalorder %s172, %s173
      %p185 = scmp.eq.s32.totalorder %s34, 1
      %p186 = por %p184, %p185
      %p188 = scmp.ne.s32.totalorder %s173, %s187
      %p189 = scmp.eq.s32.totalorder %s34, 0
      %p190 = por %p188, %p189
      %s192 = sadd.s32 %s191, 1
      %p195 = scmp.eq.s32.totalorder %s28, 1
      %p196 = scmp.ne.s32.totalorder %s191, %s193
      %p197 = scmp.eq.s32.totalorder %s28, 0
      %p198 = por %p196, %p197
      %p199 = scmp.ne.s32.totalorder %s191, %s193
      %p200 = scmp.eq.s32.totalorder %s33, 1
      %p201 = por %p199, %p200
      %p202 = scmp.ne.s32.totalorder %s193, %s194
      %p203 = scmp.eq.s32.totalorder %s33, 0
      %p204 = por %p202, %p203
      %p205 = scmp.ne.s32.totalorder %s193, %s194
      %p206 = scmp.eq.s32.totalorder %s34, 1
      %p207 = por %p205, %p206
      %p209 = scmp.ne.s32.totalorder %s194, %s208
      %p210 = scmp.eq.s32.totalorder %s34, 0
      %p211 = por %p209, %p210
      %s213 = sadd.s32 %s212, 1
      %p216 = scmp.eq.s32.totalorder %s28, 1
      %p217 = scmp.ne.s32.totalorder %s212, %s214
      %p218 = scmp.eq.s32.totalorder %s28, 0
      %p219 = por %p217, %p218
      %p220 = scmp.ne.s32.totalorder %s212, %s214
      %p221 = scmp.eq.s32.totalorder %s33, 1
      %p222 = por %p220, %p221
      %p223 = scmp.ne.s32.totalorder %s214, %s215
      %p224 = scmp.eq.s32.totalorder %s33, 0
      %p225 = por %p223, %p224
      %p226 = scmp.ne.s32.totalorder %s214, %s215
      %p227 = scmp.eq.s32.totalorder %s34, 1
      %p228 = por %p226, %p227
      %p230 = scmp.ne.s32.totalorder %s215, %s229
      %p231 = scmp.eq.s32.totalorder %s34, 0
      %p232 = por %p230, %p231
      %s234 = sadd.s32 %s233, 1
      %p237 = scmp.eq.s32.totalorder %s28, 1
      %p238 = scmp.ne.s32.totalorder %s233, %s235
      %p239 = scmp.eq.s32.totalorder %s28, 0
      %p240 = por %p238, %p239
      %p241 = scmp.ne.s32.totalorder %s233, %s235
      %p242 = scmp.eq.s32.totalorder %s33, 1
      %p243 = por %p241, %p242
      %p244 = scmp.ne.s32.totalorder %s235, %s236
      %p245 = scmp.eq.s32.totalorder %s33, 0
      %p246 = por %p244, %p245
      %p247 = scmp.ne.s32.totalorder %s235, %s236
      %p248 = scmp.eq.s32.totalorder %s34, 1
      %p249 = por %p247, %p248
      %p251 = scmp.ne.s32.totalorder %s236, %s250
      %p252 = scmp.eq.s32.totalorder %s34, 0
      %p253 = por %p251, %p252
      %s255 = sadd.s32 %s254, 1
      %p258 = scmp.eq.s32.totalorder %s28, 1
      %p259 = scmp.ne.s32.totalorder %s254, %s256
      %p260 = scmp.eq.s32.totalorder %s28, 0
      %p261 = por %p259, %p260
      %p262 = scmp.ne.s32.totalorder %s254, %s256
      %p263 = scmp.eq.s32.totalorder %s33, 1
      %p264 = por %p262, %p263
      %p265 = scmp.ne.s32.totalorder %s256, %s257
      %p266 = scmp.eq.s32.totalorder %s33, 0
      %p267 = por %p265, %p266
      %p268 = scmp.ne.s32.totalorder %s256, %s257
      %p269 = scmp.eq.s32.totalorder %s34, 1
      %p270 = por %p268, %p269
      %p272 = scmp.ne.s32.totalorder %s257, %s271
      %p273 = scmp.eq.s32.totalorder %s34, 0
      %p274 = por %p272, %p273
      %s276 = sadd.s32 %s275, 1
      %p279 = scmp.eq.s32.totalorder %s28, 1
      %p280 = scmp.ne.s32.totalorder %s275, %s277
      %p281 = scmp.eq.s32.totalorder %s28, 0
      %p282 = por %p280, %p281
      %p283 = scmp.ne.s32.totalorder %s275, %s277
      %p284 = scmp.eq.s32.totalorder %s33, 1
      %p285 = por %p283, %p284
      %p286 = scmp.ne.s32.totalorder %s277, %s278
      %p287 = scmp.eq.s32.totalorder %s33, 0
      %p288 = por %p286, %p287
      %p289 = scmp.ne.s32.totalorder %s277, %s278
      %p290 = scmp.eq.s32.totalorder %s34, 1
      %p291 = por %p289, %p290
      %p293 = scmp.ne.s32.totalorder %s278, %s292
      %p294 = scmp.eq.s32.totalorder %s34, 0
      %p295 = por %p293, %p294
      %s296 = ssub.s32 %s35, %s47
      %s297 = ssub.s32 %s36, %s43
      %s298 = sor.u32 %s296, %s297
      %p299 = scmp.eq.s32.totalorder %s298, 0
      %s301 = sadd.s32 %s300, 1
      %s302 = scalar_select %p299, %s300, %s301
      %p305 = pneg %p299
      %p306 = scmp.eq.s32.totalorder %s28, 1
      %p307 = por %p305, %p306
      %p308 = scmp.ne.s32.totalorder %s300, %s303
      %p309 = scmp.eq.s32.totalorder %s28, 0
      %p310 = por %p308, %p309
      %p311 = scmp.ne.s32.totalorder %s300, %s303
      %p312 = scmp.eq.s32.totalorder %s33, 1
      %p313 = por %p311, %p312
      %p314 = scmp.ne.s32.totalorder %s303, %s304
      %p315 = scmp.eq.s32.totalorder %s33, 0
      %p316 = por %p314, %p315
      %p317 = scmp.ne.s32.totalorder %s303, %s304
      %p318 = scmp.eq.s32.totalorder %s34, 1
      %p319 = por %p317, %p318
      %p321 = scmp.ne.s32.totalorder %s304, %s320
      %p322 = scmp.eq.s32.totalorder %s34, 0
      %p323 = por %p321, %p322
      %p324 = scmp.le.s32.totalorder 1, %s28
      %p325 = scmp.lt.s32.totalorder %s28, 3
      %p326 = pnand %p324, %p325
      %p327 = pneg %p326
      // Predicated region
      $region9: #{tpu_custom_call.1} parent=5 // pred_check
        _
      $region10: #{tpu_custom_call.1} parent=5 // pred_check_branch
        %329 = sbr.rel (%p326) target = $region12
      $region11: #{tpu_custom_call.1} parent=5 // pred_region
        %s330 = ssub.s32 %s28, 1
        // Predicated region
        $region13: #{tpu_custom_call.1} parent=11 // pred_check
          %p331 = pneg %p141
        $region14: #{tpu_custom_call.1} parent=11 // pred_check_branch
          %333 = sbr.rel (%p331) target = $region16
        $region15: #{tpu_custom_call.1} parent=11 // pred_region
          _
        $region16: #{tpu_custom_call.1} parent=11 // pred_fallthru
          _
        // Predicated region
        $region17: #{tpu_custom_call.1} parent=11 // pred_check
          %p334 = pneg %p162
        $region18: #{tpu_custom_call.1} parent=11 // pred_check_branch
          %336 = sbr.rel (%p334) target = $region20
        $region19: #{tpu_custom_call.1} parent=11 // pred_region
          %s338 = ssub.s32 2048, 2048
          %339 = vsyncadd [#allocation9], %s338
          %s340 = sshll.u32 [#allocation8], 4
          %s341 = int_to_ptr.vmem [resolvable:$true] %s340
          %346 = dma.hbm_to_vmem [thread:$0]  %s4, 2048, %s341, [#allocation9], 128, 128, 8
        $region20: #{tpu_custom_call.1} parent=11 // pred_fallthru
          _
        // Predicated region
        $region21: #{tpu_custom_call.1} parent=11 // pred_check
          %p347 = pneg %p183
        $region22: #{tpu_custom_call.1} parent=11 // pred_check_branch
          %349 = sbr.rel (%p347) target = $region24
        $region23: #{tpu_custom_call.1} parent=11 // pred_region
          _
        $region24: #{tpu_custom_call.1} parent=11 // pred_fallthru
          _
        // Predicated region
        $region25: #{tpu_custom_call.1} parent=11 // pred_check
          %p350 = pneg %p204
        $region26: #{tpu_custom_call.1} parent=11 // pred_check_branch
          %352 = sbr.rel (%p350) target = $region28
        $region27: #{tpu_custom_call.1} parent=11 // pred_region
          %s354 = ssub.s32 2048, 2048
          %355 = vsyncadd [#allocation9], %s354
          %s356 = sshll.u32 [#allocation10], 4
          %s357 = int_to_ptr.vmem [resolvable:$true] %s356
          %362 = dma.hbm_to_vmem [thread:$0]  %s6, 2048, %s357, [#allocation9], 128, 128, 8
        $region28: #{tpu_custom_call.1} parent=11 // pred_fallthru
          _
        // Predicated region
        $region29: #{tpu_custom_call.1} parent=11 // pred_check
          %p363 = pneg %p225
        $region30: #{tpu_custom_call.1} parent=11 // pred_check_branch
          %365 = sbr.rel (%p363) target = $region32
        $region31: #{tpu_custom_call.1} parent=11 // pred_region
          _
        $region32: #{tpu_custom_call.1} parent=11 // pred_fallthru
          _
        // Predicated region
        $region33: #{tpu_custom_call.1} parent=11 // pred_check
          %p366 = pneg %p246
        $region34: #{tpu_custom_call.1} parent=11 // pred_check_branch
          %368 = sbr.rel (%p366) target = $region36
        $region35: #{tpu_custom_call.1} parent=11 // pred_region
          %s370 = ssub.s32 2048, 2048
          %371 = vsyncadd [#allocation12], %s370
          %s372 = sshll.u32 [#allocation11], 4
          %s373 = int_to_ptr.vmem [resolvable:$true] %s372
          %378 = dma.hbm_to_vmem [thread:$0]  %s8, 2048, %s373, [#allocation12], 128, 128, 8
        $region36: #{tpu_custom_call.1} parent=11 // pred_fallthru
          _
        // Predicated region
        $region37: #{tpu_custom_call.1} parent=11 // pred_check
          %p379 = pneg %p267
        $region38: #{tpu_custom_call.1} parent=11 // pred_check_branch
          %381 = sbr.rel (%p379) target = $region40
        $region39: #{tpu_custom_call.1} parent=11 // pred_region
          %s383 = ssub.s32 2048, 2048
          %384 = vsyncadd [#allocation12], %s383
          %s385 = sshll.u32 [#allocation13], 4
          %s386 = int_to_ptr.vmem [resolvable:$true] %s385
          %391 = dma.hbm_to_vmem [thread:$0]  %s9, 2048, %s386, [#allocation12], 128, 128, 8
        $region40: #{tpu_custom_call.1} parent=11 // pred_fallthru
          _
        // Predicated region
        $region41: #{tpu_custom_call.1} parent=11 // pred_check
          %p392 = pneg %p288
        $region42: #{tpu_custom_call.1} parent=11 // pred_check_branch
          %394 = sbr.rel (%p392) target = $region44
        $region43: #{tpu_custom_call.1} parent=11 // pred_region
          _
        $region44: #{tpu_custom_call.1} parent=11 // pred_fallthru
          _
      $region12: #{tpu_custom_call.1} parent=5 // pred_fallthru
        _
      %p395 = scmp.lt.s32.totalorder %s28, 2
      // Predicated region
      $region45: #{tpu_custom_call.1} parent=5 // pred_check
        %p396 = pneg %p395
      $region46: #{tpu_custom_call.1} parent=5 // pred_check_branch
        %398 = sbr.rel (%p396) target = $region48
      $region47: #{tpu_custom_call.1} parent=5 // pred_region
        // Predicated region
        $region49: #{tpu_custom_call.1} parent=47 // pred_check
          %p399 = pneg %p62
        $region50: #{tpu_custom_call.1} parent=47 // pred_check_branch
          %401 = sbr.rel (%p399) target = $region52
        $region51: #{tpu_custom_call.1} parent=47 // pred_region
          %s402 = sand.u32 %s52, 1
          %s403 = scalar_lea.sflag [#allocation3], %s402
          %s404 = sand.u32 %s52, 1
          %s405 = smul.addr %s404, 8
          %s406 = scalar_lea.vmem [#allocation2], %s405
          %s408 = ssub.s32 128, 128
          %409 = vsyncadd %s403, %s408
          %s410 = sadd.s32 %s36, %s35
          %s411 = smul.addr %s410, 128
          %s412 = scalar_lea.hbm %s0, %s411
          %s414 = sshll.u32 %s406, 4
          %s415 = int_to_ptr.vmem [resolvable:$true] %s414
          %417 = dma.hbm_to_vmem [thread:$0]  %s412, 128, %s415, %s403
        $region52: #{tpu_custom_call.1} parent=47 // pred_fallthru
          _
        // Predicated region
        $region53: #{tpu_custom_call.1} parent=47 // pred_check
          %p418 = pneg %p88
        $region54: #{tpu_custom_call.1} parent=47 // pred_check_branch
          %420 = sbr.rel (%p418) target = $region56
        $region55: #{tpu_custom_call.1} parent=47 // pred_region
          %s421 = sand.u32 %s28, 1
          %s422 = scalar_lea.sflag [#allocation6], %s421
          %s423 = sand.u32 %s78, 1
          %s424 = smul.addr %s423, 128
          %s425 = scalar_lea.vmem [#allocation5], %s424
          %s427 = ssub.s32 2048, 2048
          %428 = vsyncadd %s422, %s427
          %s429 = smul.addr %s35, 16
          %s430 = smul.addr %s429, 128
          %s431 = scalar_lea.hbm %s1, %s430
          %s432 = sshll.u32 %s425, 4
          %s433 = int_to_ptr.vmem [resolvable:$true] %s432
          %438 = dma.hbm_to_vmem [thread:$0]  %s431, 2048, %s433, %s422, 128, 128, 8
        $region56: #{tpu_custom_call.1} parent=47 // pred_fallthru
          _
        // Predicated region
        $region57: #{tpu_custom_call.1} parent=47 // pred_check
          %p439 = pneg %p114
        $region58: #{tpu_custom_call.1} parent=47 // pred_check_branch
          %441 = sbr.rel (%p439) target = $region60
        $region59: #{tpu_custom_call.1} parent=47 // pred_region
          %s442 = sand.u32 %s28, 1
          %s443 = scalar_lea.sflag [#allocation6], %s442
          %s444 = sand.u32 %s104, 1
          %s445 = smul.addr %s444, 128
          %s446 = scalar_lea.vmem [#allocation7], %s445
          %s448 = ssub.s32 2048, 2048
          %449 = vsyncadd %s443, %s448
          %s450 = smul.addr %s35, 16
          %s451 = smul.addr %s450, 128
          %s452 = scalar_lea.hbm %s2, %s451
          %s453 = sshll.u32 %s446, 4
          %s454 = int_to_ptr.vmem [resolvable:$true] %s453
          %459 = dma.hbm_to_vmem [thread:$0]  %s452, 2048, %s454, %s443, 128, 128, 8
        $region60: #{tpu_custom_call.1} parent=47 // pred_fallthru
          _
      $region48: #{tpu_custom_call.1} parent=5 // pred_fallthru
        _
      %p460 = scmp.le.s32.totalorder 1, %s28
      %p461 = scmp.lt.s32.totalorder %s28, 3
      %p462 = pnand %p460, %p461
      %p463 = pneg %p462
      // Predicated region
      $region61: #{tpu_custom_call.1} parent=5 // pred_check
        _
      $region62: #{tpu_custom_call.1} parent=5 // pred_check_branch
        %465 = sbr.rel (%p462) target = $region64
      $region63: #{tpu_custom_call.1} parent=5 // pred_region
        %s466 = ssub.s32 %s28, 1
        %s467 = sand.u32 %s55, 1
        %s468 = scalar_lea.sflag [#allocation3], %s467
        %s469 = sand.u32 %s55, 1
        %s470 = smul.addr %s469, 8
        %s471 = scalar_lea.vmem [#allocation2], %s470
        // Predicated region
        $region65: #{tpu_custom_call.1} parent=63 // pred_check
          %p472 = pneg %p68
        $region66: #{tpu_custom_call.1} parent=63 // pred_check_branch
          %474 = sbr.rel (%p472) target = $region68
        $region67: #{tpu_custom_call.1} parent=63 // pred_region
          %475 = dma.done %s468, 128
        $region68: #{tpu_custom_call.1} parent=63 // pred_fallthru
          _
        %s476 = sand.u32 %s33, 1
        %s477 = scalar_lea.sflag [#allocation6], %s476
        %s478 = sand.u32 %s81, 1
        %s479 = smul.addr %s478, 128
        %s480 = scalar_lea.vmem [#allocation5], %s479
        // Predicated region
        $region69: #{tpu_custom_call.1} parent=63 // pred_check
          %p481 = pneg %p94
        $region70: #{tpu_custom_call.1} parent=63 // pred_check_branch
          %483 = sbr.rel (%p481) target = $region72
        $region71: #{tpu_custom_call.1} parent=63 // pred_region
          %484 = dma.done %s477, 2048
        $region72: #{tpu_custom_call.1} parent=63 // pred_fallthru
          _
        %s485 = sand.u32 %s33, 1
        %s486 = scalar_lea.sflag [#allocation6], %s485
        %s487 = sand.u32 %s107, 1
        %s488 = smul.addr %s487, 128
        %s489 = scalar_lea.vmem [#allocation7], %s488
        // Predicated region
        $region73: #{tpu_custom_call.1} parent=63 // pred_check
          %p490 = pneg %p120
        $region74: #{tpu_custom_call.1} parent=63 // pred_check_branch
          %492 = sbr.rel (%p490) target = $region76
        $region75: #{tpu_custom_call.1} parent=63 // pred_region
          %493 = dma.done %s486, 2048
        $region76: #{tpu_custom_call.1} parent=63 // pred_fallthru
          _
        // Predicated region
        $region77: #{tpu_custom_call.1} parent=63 // pred_check
          %p494 = pneg %p162
        $region78: #{tpu_custom_call.1} parent=63 // pred_check_branch
          %496 = sbr.rel (%p494) target = $region80
        $region79: #{tpu_custom_call.1} parent=63 // pred_region
          %497 = dma.done [#allocation9], 2048
        $region80: #{tpu_custom_call.1} parent=63 // pred_fallthru
          _
        // Predicated region
        $region81: #{tpu_custom_call.1} parent=63 // pred_check
          %p498 = pneg %p204
        $region82: #{tpu_custom_call.1} parent=63 // pred_check_branch
          %500 = sbr.rel (%p498) target = $region84
        $region83: #{tpu_custom_call.1} parent=63 // pred_region
          %501 = dma.done [#allocation9], 2048
        $region84: #{tpu_custom_call.1} parent=63 // pred_fallthru
          _
        // Predicated region
        $region85: #{tpu_custom_call.1} parent=63 // pred_check
          %p502 = pneg %p246
        $region86: #{tpu_custom_call.1} parent=63 // pred_check_branch
          %504 = sbr.rel (%p502) target = $region88
        $region87: #{tpu_custom_call.1} parent=63 // pred_region
          %505 = dma.done [#allocation12], 2048
        $region88: #{tpu_custom_call.1} parent=63 // pred_fallthru
          _
        // Predicated region
        $region89: #{tpu_custom_call.1} parent=63 // pred_check
          %p506 = pneg %p267
        $region90: #{tpu_custom_call.1} parent=63 // pred_check_branch
          %508 = sbr.rel (%p506) target = $region92
        $region91: #{tpu_custom_call.1} parent=63 // pred_region
          %509 = dma.done [#allocation12], 2048
        $region92: #{tpu_custom_call.1} parent=63 // pred_fallthru
          _
        %s510 = sand.u32 %s55, 1
        %s511 = scalar_lea.sflag [#allocation3], %s510
        %s512 = sand.u32 %s55, 1
        %s513 = smul.addr %s512, 8
        %s514 = scalar_lea.vmem [#allocation2], %s513
        %p515 = pneg %p68
        %p516 = pneg %p65
        %s517 = sand.u32 %s33, 1
        %s518 = scalar_lea.sflag [#allocation6], %s517
        %s519 = sand.u32 %s81, 1
        %s520 = smul.addr %s519, 128
        %s521 = scalar_lea.vmem [#allocation5], %s520
        %p522 = pneg %p94
        %p523 = pneg %p91
        %s524 = sand.u32 %s33, 1
        %s525 = scalar_lea.sflag [#allocation6], %s524
        %s526 = sand.u32 %s107, 1
        %s527 = smul.addr %s526, 128
        %s528 = scalar_lea.vmem [#allocation7], %s527
        %p529 = pneg %p120
        %p530 = pneg %p117
        %p531 = pneg %p141
        %p532 = pneg %p138
        %p533 = pneg %p162
        %p534 = pneg %p159
        %p535 = pneg %p183
        %p536 = pneg %p180
        %p537 = pneg %p204
        %p538 = pneg %p201
        %p539 = pneg %p225
        %p540 = pneg %p222
        %p541 = pneg %p246
        %p542 = pneg %p243
        %p543 = pneg %p267
        %p544 = pneg %p264
        %p545 = pneg %p288
        %p546 = pneg %p285
        %p547 = pneg %p316
        %p548 = pneg %p313
        %s549 = sand.u32 %s303, 1
        %s550 = scalar_lea.sflag [#allocation4], %s549
        %s551 = sand.u32 %s303, 1
        %s552 = smul.addr %s551, 8
        %s553 = scalar_lea.vmem [#allocation14], %s552
        %v554 = vld [vmem:[%s471] sm:$0xff]
        %v555 = vld [vmem:[%s480] sm:$0xff]
        %v556 = vld [vmem:[%s480 + $0x8] sm:$0xff]
        %v557 = vld [vmem:[%s480 + $0x10] sm:$0xff]
        %v558 = vld [vmem:[%s480 + $0x18] sm:$0xff]
        %v559 = vld [vmem:[%s480 + $0x20] sm:$0xff]
        %v560 = vld [vmem:[%s480 + $0x28] sm:$0xff]
        %v561 = vld [vmem:[%s480 + $0x30] sm:$0xff]
        %v562 = vld [vmem:[%s480 + $0x38] sm:$0xff]
        %v563 = vld [vmem:[%s480 + $0x40] sm:$0xff]
        %v564 = vld [vmem:[%s480 + $0x48] sm:$0xff]
        %v565 = vld [vmem:[%s480 + $0x50] sm:$0xff]
        %v566 = vld [vmem:[%s480 + $0x58] sm:$0xff]
        %v567 = vld [vmem:[%s480 + $0x60] sm:$0xff]
        %v568 = vld [vmem:[%s480 + $0x68] sm:$0xff]
        %v569 = vld [vmem:[%s480 + $0x70] sm:$0xff]
        %v570 = vld [vmem:[%s480 + $0x78] sm:$0xff]
        %v571 = vld [vmem:[%s489] sm:$0xff]
        %v572 = vld [vmem:[%s489 + $0x8] sm:$0xff]
        %v573 = vld [vmem:[%s489 + $0x10] sm:$0xff]
        %v574 = vld [vmem:[%s489 + $0x18] sm:$0xff]
        %v575 = vld [vmem:[%s489 + $0x20] sm:$0xff]
        %v576 = vld [vmem:[%s489 + $0x28] sm:$0xff]
        %v577 = vld [vmem:[%s489 + $0x30] sm:$0xff]
        %v578 = vld [vmem:[%s489 + $0x38] sm:$0xff]
        %v579 = vld [vmem:[%s489 + $0x40] sm:$0xff]
        %v580 = vld [vmem:[%s489 + $0x48] sm:$0xff]
        %v581 = vld [vmem:[%s489 + $0x50] sm:$0xff]
        %v582 = vld [vmem:[%s489 + $0x58] sm:$0xff]
        %v583 = vld [vmem:[%s489 + $0x60] sm:$0xff]
        %v584 = vld [vmem:[%s489 + $0x68] sm:$0xff]
        %v585 = vld [vmem:[%s489 + $0x70] sm:$0xff]
        %v586 = vld [vmem:[%s489 + $0x78] sm:$0xff]
        %v587 = vld [vmem:[#allocation8] sm:$0xff]
        %v588 = vld [vmem:[#allocation8 + $0x8] sm:$0xff]
        %v589 = vld [vmem:[#allocation8 + $0x10] sm:$0xff]
        %v590 = vld [vmem:[#allocation8 + $0x18] sm:$0xff]
        %v591 = vld [vmem:[#allocation8 + $0x20] sm:$0xff]
        %v592 = vld [vmem:[#allocation8 + $0x28] sm:$0xff]
        %v593 = vld [vmem:[#allocation8 + $0x30] sm:$0xff]
        %v594 = vld [vmem:[#allocation8 + $0x38] sm:$0xff]
        %v595 = vld [vmem:[#allocation8 + $0x40] sm:$0xff]
        %v596 = vld [vmem:[#allocation8 + $0x48] sm:$0xff]
        %v597 = vld [vmem:[#allocation8 + $0x50] sm:$0xff]
        %v598 = vld [vmem:[#allocation8 + $0x58] sm:$0xff]
        %v599 = vld [vmem:[#allocation8 + $0x60] sm:$0xff]
        %v600 = vld [vmem:[#allocation8 + $0x68] sm:$0xff]
        %v601 = vld [vmem:[#allocation8 + $0x70] sm:$0xff]
        %v602 = vld [vmem:[#allocation8 + $0x78] sm:$0xff]
        %v603 = vld [vmem:[%s5] sm:$0x1]
        %v605 = vlaneseq
        %v606 = vshrl.u32 %v605, 7
        %v607 = vsub.s32 0, %v606
        %v608 = vrot.slane %v603, %v607
        %610 = vmatprep.subr.mxu0 0.0
        %611 = vmatpush1.msra.mxu0 %v602
        %612 = vmatprep.subr.mxu0 0.0
        %613 = vmatpush1.msra.mxu0 %v601
        %614 = vmatprep.subr.mxu0 0.0
        %615 = vmatpush1.msra.mxu0 %v600
        %616 = vmatprep.subr.mxu0 0.0
        %617 = vmatpush1.msra.mxu0 %v599
        %618 = vmatprep.subr.mxu0 0.0
        %619 = vmatpush1.msra.mxu0 %v598
        %620 = vmatprep.subr.mxu0 0.0
        %621 = vmatpush1.msra.mxu0 %v597
        %622 = vmatprep.subr.mxu0 0.0
        %623 = vmatpush1.msra.mxu0 %v596
        %624 = vmatprep.subr.mxu0 0.0
        %625 = vmatpush1.msra.mxu0 %v595
        %626 = vmatprep.subr.mxu0 0.0
        %627 = vmatpush1.msra.mxu0 %v594
        %628 = vmatprep.subr.mxu0 0.0
        %629 = vmatpush1.msra.mxu0 %v593
        %630 = vmatprep.subr.mxu0 0.0
        %631 = vmatpush1.msra.mxu0 %v592
        %632 = vmatprep.subr.mxu0 0.0
        %633 = vmatpush1.msra.mxu0 %v591
        %634 = vmatprep.subr.mxu0 0.0
        %635 = vmatpush1.msra.mxu0 %v590
        %636 = vmatprep.subr.mxu0 0.0
        %637 = vmatpush1.msra.mxu0 %v589
        %638 = vmatprep.subr.mxu0 0.0
        %639 = vmatpush1.msra.mxu0 %v588
        %640 = vmatprep.subr.mxu0 0.0
        %641 = vmatpush1.msra.mxu0 %v587
        %642 = vmatprep.subr.mxu0 0.0
        %643 = vmatpush2.msra.mxu0 0.0
        %644 = vmatprep.subr.mxu0 0.0
        %645 = vmatpush2.msra.mxu0 0.0
        %646 = vmatprep.subr.mxu0 0.0
        %647 = vmatpush2.msra.mxu0 0.0
        %648 = vmatprep.subr.mxu0 0.0
        %649 = vmatpush2.msra.mxu0 0.0
        %650 = vmatprep.subr.mxu0 0.0
        %651 = vmatpush2.msra.mxu0 0.0
        %652 = vmatprep.subr.mxu0 0.0
        %653 = vmatpush2.msra.mxu0 0.0
        %654 = vmatprep.subr.mxu0 0.0
        %655 = vmatpush2.msra.mxu0 0.0
        %656 = vmatprep.subr.mxu0 0.0
        %657 = vmatpush2.msra.mxu0 0.0
        %658 = vmatprep.subr.mxu0 0.0
        %659 = vmatpush2.msra.mxu0 0.0
        %660 = vmatprep.subr.mxu0 0.0
        %661 = vmatpush2.msra.mxu0 0.0
        %662 = vmatprep.subr.mxu0 0.0
        %663 = vmatpush2.msra.mxu0 0.0
        %664 = vmatprep.subr.mxu0 0.0
        %665 = vmatpush2.msra.mxu0 0.0
        %666 = vmatprep.subr.mxu0 0.0
        %667 = vmatpush2.msra.mxu0 0.0
        %668 = vmatprep.subr.mxu0 0.0
        %669 = vmatpush2.msra.mxu0 0.0
        %670 = vmatprep.subr.mxu0 0.0
        %671 = vmatpush2.msra.mxu0 0.0
        %672 = vmatprep.subr.mxu0 0.0
        %673 = vmatpush2.msra.mxu0 0.0
        %674 = vmatprep.mubr.f32.mxu0 0.0
        %675 = vmatmul.mubr.f32.gmra.mxu0 %v554
        %v676 = vpop.f32.mrf.mxu0
        %v677 = vadd.f32 %v608, %v676
        %v678 = vpop.f32.mrf.mxu0
        %679 = vdwg.mxu0
        %v680 = vld [vmem:[#allocation10] sm:$0xff]
        %v681 = vld [vmem:[#allocation10 + $0x8] sm:$0xff]
        %v682 = vld [vmem:[#allocation10 + $0x10] sm:$0xff]
        %v683 = vld [vmem:[#allocation10 + $0x18] sm:$0xff]
        %v684 = vld [vmem:[#allocation10 + $0x20] sm:$0xff]
        %v685 = vld [vmem:[#allocation10 + $0x28] sm:$0xff]
        %v686 = vld [vmem:[#allocation10 + $0x30] sm:$0xff]
        %v687 = vld [vmem:[#allocation10 + $0x38] sm:$0xff]
        %v688 = vld [vmem:[#allocation10 + $0x40] sm:$0xff]
        %v689 = vld [vmem:[#allocation10 + $0x48] sm:$0xff]
        %v690 = vld [vmem:[#allocation10 + $0x50] sm:$0xff]
        %v691 = vld [vmem:[#allocation10 + $0x58] sm:$0xff]
        %v692 = vld [vmem:[#allocation10 + $0x60] sm:$0xff]
        %v693 = vld [vmem:[#allocation10 + $0x68] sm:$0xff]
        %v694 = vld [vmem:[#allocation10 + $0x70] sm:$0xff]
        %v695 = vld [vmem:[#allocation10 + $0x78] sm:$0xff]
        %v696 = vld [vmem:[%s7] sm:$0x1]
        %v698 = vlaneseq
        %v699 = vshrl.u32 %v698, 7
        %v700 = vsub.s32 0, %v699
        %v701 = vrot.slane %v696, %v700
        %703 = vmatprep.subr.mxu0 0.0
        %704 = vmatpush1.msra.mxu0 %v695
        %705 = vmatprep.subr.mxu0 0.0
        %706 = vmatpush1.msra.mxu0 %v694
        %707 = vmatprep.subr.mxu0 0.0
        %708 = vmatpush1.msra.mxu0 %v693
        %709 = vmatprep.subr.mxu0 0.0
        %710 = vmatpush1.msra.mxu0 %v692
        %711 = vmatprep.subr.mxu0 0.0
        %712 = vmatpush1.msra.mxu0 %v691
        %713 = vmatprep.subr.mxu0 0.0
        %714 = vmatpush1.msra.mxu0 %v690
        %715 = vmatprep.subr.mxu0 0.0
        %716 = vmatpush1.msra.mxu0 %v689
        %717 = vmatprep.subr.mxu0 0.0
        %718 = vmatpush1.msra.mxu0 %v688
        %719 = vmatprep.subr.mxu0 0.0
        %720 = vmatpush1.msra.mxu0 %v687
        %721 = vmatprep.subr.mxu0 0.0
        %722 = vmatpush1.msra.mxu0 %v686
        %723 = vmatprep.subr.mxu0 0.0
        %724 = vmatpush1.msra.mxu0 %v685
        %725 = vmatprep.subr.mxu0 0.0
        %726 = vmatpush1.msra.mxu0 %v684
        %727 = vmatprep.subr.mxu0 0.0
        %728 = vmatpush1.msra.mxu0 %v683
        %729 = vmatprep.subr.mxu0 0.0
        %730 = vmatpush1.msra.mxu0 %v682
        %731 = vmatprep.subr.mxu0 0.0
        %732 = vmatpush1.msra.mxu0 %v681
        %733 = vmatprep.subr.mxu0 0.0
        %734 = vmatpush1.msra.mxu0 %v680
        %735 = vmatprep.subr.mxu0 0.0
        %736 = vmatpush2.msra.mxu0 0.0
        %737 = vmatprep.subr.mxu0 0.0
        %738 = vmatpush2.msra.mxu0 0.0
        %739 = vmatprep.subr.mxu0 0.0
        %740 = vmatpush2.msra.mxu0 0.0
        %741 = vmatprep.subr.mxu0 0.0
        %742 = vmatpush2.msra.mxu0 0.0
        %743 = vmatprep.subr.mxu0 0.0
        %744 = vmatpush2.msra.mxu0 0.0
        %745 = vmatprep.subr.mxu0 0.0
        %746 = vmatpush2.msra.mxu0 0.0
        %747 = vmatprep.subr.mxu0 0.0
        %748 = vmatpush2.msra.mxu0 0.0
        %749 = vmatprep.subr.mxu0 0.0
        %750 = vmatpush2.msra.mxu0 0.0
        %751 = vmatprep.subr.mxu0 0.0
        %752 = vmatpush2.msra.mxu0 0.0
        %753 = vmatprep.subr.mxu0 0.0
        %754 = vmatpush2.msra.mxu0 0.0
        %755 = vmatprep.subr.mxu0 0.0
        %756 = vmatpush2.msra.mxu0 0.0
        %757 = vmatprep.subr.mxu0 0.0
        %758 = vmatpush2.msra.mxu0 0.0
        %759 = vmatprep.subr.mxu0 0.0
        %760 = vmatpush2.msra.mxu0 0.0
        %761 = vmatprep.subr.mxu0 0.0
        %762 = vmatpush2.msra.mxu0 0.0
        %763 = vmatprep.subr.mxu0 0.0
        %764 = vmatpush2.msra.mxu0 0.0
        %765 = vmatprep.subr.mxu0 0.0
        %766 = vmatpush2.msra.mxu0 0.0
        %767 = vmatprep.mubr.f32.mxu0 0.0
        %768 = vmatmul.mubr.f32.gmra.mxu0 %v555
        %v769 = vpop.f32.mrf.mxu0
        %v770 = vadd.f32 %v701, %v769
        %v771 = vpop.f32.mrf.mxu0
        %772 = vmatprep.mubr.f32.mxu0 0.0
        %773 = vmatmul.mubr.f32.gmra.mxu0 %v556
        %v774 = vpop.f32.mrf.mxu0
        %v775 = vadd.f32 %v701, %v774
        %v776 = vpop.f32.mrf.mxu0
        %777 = vmatprep.mubr.f32.mxu0 0.0
        %778 = vmatmul.mubr.f32.gmra.mxu0 %v557
        %v779 = vpop.f32.mrf.mxu0
        %v780 = vadd.f32 %v701, %v779
        %v781 = vpop.f32.mrf.mxu0
        %782 = vmatprep.mubr.f32.mxu0 0.0
        %783 = vmatmul.mubr.f32.gmra.mxu0 %v558
        %v784 = vpop.f32.mrf.mxu0
        %v785 = vadd.f32 %v701, %v784
        %v786 = vpop.f32.mrf.mxu0
        %787 = vmatprep.mubr.f32.mxu0 0.0
        %788 = vmatmul.mubr.f32.gmra.mxu0 %v559
        %v789 = vpop.f32.mrf.mxu0
        %v790 = vadd.f32 %v701, %v789
        %v791 = vpop.f32.mrf.mxu0
        %792 = vmatprep.mubr.f32.mxu0 0.0
        %793 = vmatmul.mubr.f32.gmra.mxu0 %v560
        %v794 = vpop.f32.mrf.mxu0
        %v795 = vadd.f32 %v701, %v794
        %v796 = vpop.f32.mrf.mxu0
        %797 = vmatprep.mubr.f32.mxu0 0.0
        %798 = vmatmul.mubr.f32.gmra.mxu0 %v561
        %v799 = vpop.f32.mrf.mxu0
        %v800 = vadd.f32 %v701, %v799
        %v801 = vpop.f32.mrf.mxu0
        %802 = vmatprep.mubr.f32.mxu0 0.0
        %803 = vmatmul.mubr.f32.gmra.mxu0 %v562
        %v804 = vpop.f32.mrf.mxu0
        %v805 = vadd.f32 %v701, %v804
        %v806 = vpop.f32.mrf.mxu0
        %807 = vmatprep.mubr.f32.mxu0 0.0
        %808 = vmatmul.mubr.f32.gmra.mxu0 %v563
        %v809 = vpop.f32.mrf.mxu0
        %v810 = vadd.f32 %v701, %v809
        %v811 = vpop.f32.mrf.mxu0
        %812 = vmatprep.mubr.f32.mxu0 0.0
        %813 = vmatmul.mubr.f32.gmra.mxu0 %v564
        %v814 = vpop.f32.mrf.mxu0
        %v815 = vadd.f32 %v701, %v814
        %v816 = vpop.f32.mrf.mxu0
        %817 = vmatprep.mubr.f32.mxu0 0.0
        %818 = vmatmul.mubr.f32.gmra.mxu0 %v565
        %v819 = vpop.f32.mrf.mxu0
        %v820 = vadd.f32 %v701, %v819
        %v821 = vpop.f32.mrf.mxu0
        %822 = vmatprep.mubr.f32.mxu0 0.0
        %823 = vmatmul.mubr.f32.gmra.mxu0 %v566
        %v824 = vpop.f32.mrf.mxu0
        %v825 = vadd.f32 %v701, %v824
        %v826 = vpop.f32.mrf.mxu0
        %827 = vmatprep.mubr.f32.mxu0 0.0
        %828 = vmatmul.mubr.f32.gmra.mxu0 %v567
        %v829 = vpop.f32.mrf.mxu0
        %v830 = vadd.f32 %v701, %v829
        %v831 = vpop.f32.mrf.mxu0
        %832 = vmatprep.mubr.f32.mxu0 0.0
        %833 = vmatmul.mubr.f32.gmra.mxu0 %v568
        %v834 = vpop.f32.mrf.mxu0
        %v835 = vadd.f32 %v701, %v834
        %v836 = vpop.f32.mrf.mxu0
        %837 = vmatprep.mubr.f32.mxu0 0.0
        %838 = vmatmul.mubr.f32.gmra.mxu0 %v569
        %v839 = vpop.f32.mrf.mxu0
        %v840 = vadd.f32 %v701, %v839
        %v841 = vpop.f32.mrf.mxu0
        %842 = vmatprep.mubr.f32.mxu0 0.0
        %843 = vmatmul.mubr.f32.gmra.mxu0 %v570
        %v844 = vpop.f32.mrf.mxu0
        %v845 = vadd.f32 %v701, %v844
        %v846 = vpop.f32.mrf.mxu0
        %847 = vdwg.mxu0
        %v848 = vld [vmem:[%s3] sm:$0x1]
        %v850 = vlaneseq
        %v851 = vshrl.u32 %v850, 7
        %v852 = vsub.s32 0, %v851
        %v853 = vrot.slane %v848, %v852
        %855 = vmatprep.subr.mxu0 0.0
        %856 = vmatpush1.xpose.msra.mxu0 %v845
        %857 = vmatprep.subr.mxu0 0.0
        %858 = vmatpush1.xpose.msra.mxu0 %v840
        %859 = vmatprep.subr.mxu0 0.0
        %860 = vmatpush1.xpose.msra.mxu0 %v835
        %861 = vmatprep.subr.mxu0 0.0
        %862 = vmatpush1.xpose.msra.mxu0 %v830
        %863 = vmatprep.subr.mxu0 0.0
        %864 = vmatpush1.xpose.msra.mxu0 %v825
        %865 = vmatprep.subr.mxu0 0.0
        %866 = vmatpush1.xpose.msra.mxu0 %v820
        %867 = vmatprep.subr.mxu0 0.0
        %868 = vmatpush1.xpose.msra.mxu0 %v815
        %869 = vmatprep.subr.mxu0 0.0
        %870 = vmatpush1.xpose.msra.mxu0 %v810
        %871 = vmatprep.subr.mxu0 0.0
        %872 = vmatpush1.xpose.msra.mxu0 %v805
        %873 = vmatprep.subr.mxu0 0.0
        %874 = vmatpush1.xpose.msra.mxu0 %v800
        %875 = vmatprep.subr.mxu0 0.0
        %876 = vmatpush1.xpose.msra.mxu0 %v795
        %877 = vmatprep.subr.mxu0 0.0
        %878 = vmatpush1.xpose.msra.mxu0 %v790
        %879 = vmatprep.subr.mxu0 0.0
        %880 = vmatpush1.xpose.msra.mxu0 %v785
        %881 = vmatprep.subr.mxu0 0.0
        %882 = vmatpush1.xpose.msra.mxu0 %v780
        %883 = vmatprep.subr.mxu0 0.0
        %884 = vmatpush1.xpose.msra.mxu0 %v775
        %885 = vmatprep.subr.mxu0 0.0
        %886 = vmatpush1.xpose.msra.mxu0 %v770
        %887 = vmatprep.subr.mxu0 0.0
        %888 = vmatpush2.xpose.msra.mxu0 0.0
        %889 = vmatprep.subr.mxu0 0.0
        %890 = vmatpush2.xpose.msra.mxu0 0.0
        %891 = vmatprep.subr.mxu0 0.0
        %892 = vmatpush2.xpose.msra.mxu0 0.0
        %893 = vmatprep.subr.mxu0 0.0
        %894 = vmatpush2.xpose.msra.mxu0 0.0
        %895 = vmatprep.subr.mxu0 0.0
        %896 = vmatpush2.xpose.msra.mxu0 0.0
        %897 = vmatprep.subr.mxu0 0.0
        %898 = vmatpush2.xpose.msra.mxu0 0.0
        %899 = vmatprep.subr.mxu0 0.0
        %900 = vmatpush2.xpose.msra.mxu0 0.0
        %901 = vmatprep.subr.mxu0 0.0
        %902 = vmatpush2.xpose.msra.mxu0 0.0
        %903 = vmatprep.subr.mxu0 0.0
        %904 = vmatpush2.xpose.msra.mxu0 0.0
        %905 = vmatprep.subr.mxu0 0.0
        %906 = vmatpush2.xpose.msra.mxu0 0.0
        %907 = vmatprep.subr.mxu0 0.0
        %908 = vmatpush2.xpose.msra.mxu0 0.0
        %909 = vmatprep.subr.mxu0 0.0
        %910 = vmatpush2.xpose.msra.mxu0 0.0
        %911 = vmatprep.subr.mxu0 0.0
        %912 = vmatpush2.xpose.msra.mxu0 0.0
        %913 = vmatprep.subr.mxu0 0.0
        %914 = vmatpush2.xpose.msra.mxu0 0.0
        %915 = vmatprep.subr.mxu0 0.0
        %916 = vmatpush2.xpose.msra.mxu0 0.0
        %917 = vmatprep.subr.mxu0 0.0
        %918 = vmatpush2.xpose.msra.mxu0 0.0
        %919 = vmatprep.mubr.f32.mxu0 0.0
        %920 = vmatmul.mubr.f32.gmra.mxu0 %v677
        %v921 = vpop.f32.mrf.mxu0
        %v922 = vadd.f32 %v853, %v921
        %v923 = vpop.f32.mrf.mxu0
        %924 = vdwg.mxu0
        %925 = vmax.xlane.f32.xlu0 %v922
        %v926 = vpop.xlane.xlu0 %925
        %v927 = vsub.f32 %v922, %v926
        %v928 = vmul.f32 %v927, 1.442695
        %v929 = vpow.pop %v928
        %930 = vadd.xlane.f32.xlu0 %v929
        %v931 = vpop.xlane.xlu0 %930
        %v932 = vrcp.pop %v931
        %v933 = vmul.f32 %v929, %v932
        %934 = vmatprep.subr.mxu0 0.0
        %935 = vmatpush1.msra.mxu0 %v586
        %936 = vmatprep.subr.mxu0 0.0
        %937 = vmatpush1.msra.mxu0 %v585
        %938 = vmatprep.subr.mxu0 0.0
        %939 = vmatpush1.msra.mxu0 %v584
        %940 = vmatprep.subr.mxu0 0.0
        %941 = vmatpush1.msra.mxu0 %v583
        %942 = vmatprep.subr.mxu0 0.0
        %943 = vmatpush1.msra.mxu0 %v582
        %944 = vmatprep.subr.mxu0 0.0
        %945 = vmatpush1.msra.mxu0 %v581
        %946 = vmatprep.subr.mxu0 0.0
        %947 = vmatpush1.msra.mxu0 %v580
        %948 = vmatprep.subr.mxu0 0.0
        %949 = vmatpush1.msra.mxu0 %v579
        %950 = vmatprep.subr.mxu0 0.0
        %951 = vmatpush1.msra.mxu0 %v578
        %952 = vmatprep.subr.mxu0 0.0
        %953 = vmatpush1.msra.mxu0 %v577
        %954 = vmatprep.subr.mxu0 0.0
        %955 = vmatpush1.msra.mxu0 %v576
        %956 = vmatprep.subr.mxu0 0.0
        %957 = vmatpush1.msra.mxu0 %v575
        %958 = vmatprep.subr.mxu0 0.0
        %959 = vmatpush1.msra.mxu0 %v574
        %960 = vmatprep.subr.mxu0 0.0
        %961 = vmatpush1.msra.mxu0 %v573
        %962 = vmatprep.subr.mxu0 0.0
        %963 = vmatpush1.msra.mxu0 %v572
        %964 = vmatprep.subr.mxu0 0.0
        %965 = vmatpush1.msra.mxu0 %v571
        %966 = vmatprep.subr.mxu0 0.0
        %967 = vmatpush2.msra.mxu0 0.0
        %968 = vmatprep.subr.mxu0 0.0
        %969 = vmatpush2.msra.mxu0 0.0
        %970 = vmatprep.subr.mxu0 0.0
        %971 = vmatpush2.msra.mxu0 0.0
        %972 = vmatprep.subr.mxu0 0.0
        %973 = vmatpush2.msra.mxu0 0.0
        %974 = vmatprep.subr.mxu0 0.0
        %975 = vmatpush2.msra.mxu0 0.0
        %976 = vmatprep.subr.mxu0 0.0
        %977 = vmatpush2.msra.mxu0 0.0
        %978 = vmatprep.subr.mxu0 0.0
        %979 = vmatpush2.msra.mxu0 0.0
        %980 = vmatprep.subr.mxu0 0.0
        %981 = vmatpush2.msra.mxu0 0.0
        %982 = vmatprep.subr.mxu0 0.0
        %983 = vmatpush2.msra.mxu0 0.0
        %984 = vmatprep.subr.mxu0 0.0
        %985 = vmatpush2.msra.mxu0 0.0
        %986 = vmatprep.subr.mxu0 0.0
        %987 = vmatpush2.msra.mxu0 0.0
        %988 = vmatprep.subr.mxu0 0.0
        %989 = vmatpush2.msra.mxu0 0.0
        %990 = vmatprep.subr.mxu0 0.0
        %991 = vmatpush2.msra.mxu0 0.0
        %992 = vmatprep.subr.mxu0 0.0
        %993 = vmatpush2.msra.mxu0 0.0
        %994 = vmatprep.subr.mxu0 0.0
        %995 = vmatpush2.msra.mxu0 0.0
        %996 = vmatprep.subr.mxu0 0.0
        %997 = vmatpush2.msra.mxu0 0.0
        %998 = vmatprep.mubr.f32.mxu0 0.0
        %999 = vmatmul.mubr.f32.gmra.mxu0 %v933
        %v1000 = vpop.f32.mrf.mxu0
        %v1001 = vadd.f32 0.0, %v1000
        %v1002 = vpop.f32.mrf.mxu0
        %1003 = vdwg.mxu0
        %v1004 = vld [vmem:[#allocation11] sm:$0xff]
        %v1005 = vld [vmem:[#allocation11 + $0x8] sm:$0xff]
        %v1006 = vld [vmem:[#allocation11 + $0x10] sm:$0xff]
        %v1007 = vld [vmem:[#allocation11 + $0x18] sm:$0xff]
        %v1008 = vld [vmem:[#allocation11 + $0x20] sm:$0xff]
        %v1009 = vld [vmem:[#allocation11 + $0x28] sm:$0xff]
        %v1010 = vld [vmem:[#allocation11 + $0x30] sm:$0xff]
        %v1011 = vld [vmem:[#allocation11 + $0x38] sm:$0xff]
        %v1012 = vld [vmem:[#allocation11 + $0x40] sm:$0xff]
        %v1013 = vld [vmem:[#allocation11 + $0x48] sm:$0xff]
        %v1014 = vld [vmem:[#allocation11 + $0x50] sm:$0xff]
        %v1015 = vld [vmem:[#allocation11 + $0x58] sm:$0xff]
        %v1016 = vld [vmem:[#allocation11 + $0x60] sm:$0xff]
        %v1017 = vld [vmem:[#allocation11 + $0x68] sm:$0xff]
        %v1018 = vld [vmem:[#allocation11 + $0x70] sm:$0xff]
        %v1019 = vld [vmem:[#allocation11 + $0x78] sm:$0xff]
        %v1020 = vld [vmem:[#allocation13] sm:$0xff]
        %v1021 = vld [vmem:[#allocation13 + $0x8] sm:$0xff]
        %v1022 = vld [vmem:[#allocation13 + $0x10] sm:$0xff]
        %v1023 = vld [vmem:[#allocation13 + $0x18] sm:$0xff]
        %v1024 = vld [vmem:[#allocation13 + $0x20] sm:$0xff]
        %v1025 = vld [vmem:[#allocation13 + $0x28] sm:$0xff]
        %v1026 = vld [vmem:[#allocation13 + $0x30] sm:$0xff]
        %v1027 = vld [vmem:[#allocation13 + $0x38] sm:$0xff]
        %v1028 = vld [vmem:[#allocation13 + $0x40] sm:$0xff]
        %v1029 = vld [vmem:[#allocation13 + $0x48] sm:$0xff]
        %v1030 = vld [vmem:[#allocation13 + $0x50] sm:$0xff]
        %v1031 = vld [vmem:[#allocation13 + $0x58] sm:$0xff]
        %v1032 = vld [vmem:[#allocation13 + $0x60] sm:$0xff]
        %v1033 = vld [vmem:[#allocation13 + $0x68] sm:$0xff]
        %v1034 = vld [vmem:[#allocation13 + $0x70] sm:$0xff]
        %v1035 = vld [vmem:[#allocation13 + $0x78] sm:$0xff]
        %1036 = vmatprep.subr.mxu0 0.0
        %1037 = vmatpush1.msra.mxu0 %v1035
        %1038 = vmatprep.subr.mxu0 0.0
        %1039 = vmatpush1.msra.mxu0 %v1034
        %1040 = vmatprep.subr.mxu0 0.0
        %1041 = vmatpush1.msra.mxu0 %v1033
        %1042 = vmatprep.subr.mxu0 0.0
        %1043 = vmatpush1.msra.mxu0 %v1032
        %1044 = vmatprep.subr.mxu0 0.0
        %1045 = vmatpush1.msra.mxu0 %v1031
        %1046 = vmatprep.subr.mxu0 0.0
        %1047 = vmatpush1.msra.mxu0 %v1030
        %1048 = vmatprep.subr.mxu0 0.0
        %1049 = vmatpush1.msra.mxu0 %v1029
        %1050 = vmatprep.subr.mxu0 0.0
        %1051 = vmatpush1.msra.mxu0 %v1028
        %1052 = vmatprep.subr.mxu0 0.0
        %1053 = vmatpush1.msra.mxu0 %v1027
        %1054 = vmatprep.subr.mxu0 0.0
        %1055 = vmatpush1.msra.mxu0 %v1026
        %1056 = vmatprep.subr.mxu0 0.0
        %1057 = vmatpush1.msra.mxu0 %v1025
        %1058 = vmatprep.subr.mxu0 0.0
        %1059 = vmatpush1.msra.mxu0 %v1024
        %1060 = vmatprep.subr.mxu0 0.0
        %1061 = vmatpush1.msra.mxu0 %v1023
        %1062 = vmatprep.subr.mxu0 0.0
        %1063 = vmatpush1.msra.mxu0 %v1022
        %1064 = vmatprep.subr.mxu0 0.0
        %1065 = vmatpush1.msra.mxu0 %v1021
        %1066 = vmatprep.subr.mxu0 0.0
        %1067 = vmatpush1.msra.mxu0 %v1020
        %1068 = vmatprep.subr.mxu0 0.0
        %1069 = vmatpush2.msra.mxu0 0.0
        %1070 = vmatprep.subr.mxu0 0.0
        %1071 = vmatpush2.msra.mxu0 0.0
        %1072 = vmatprep.subr.mxu0 0.0
        %1073 = vmatpush2.msra.mxu0 0.0
        %1074 = vmatprep.subr.mxu0 0.0
        %1075 = vmatpush2.msra.mxu0 0.0
        %1076 = vmatprep.subr.mxu0 0.0
        %1077 = vmatpush2.msra.mxu0 0.0
        %1078 = vmatprep.subr.mxu0 0.0
        %1079 = vmatpush2.msra.mxu0 0.0
        %1080 = vmatprep.subr.mxu0 0.0
        %1081 = vmatpush2.msra.mxu0 0.0
        %1082 = vmatprep.subr.mxu0 0.0
        %1083 = vmatpush2.msra.mxu0 0.0
        %1084 = vmatprep.subr.mxu0 0.0
        %1085 = vmatpush2.msra.mxu0 0.0
        %1086 = vmatprep.subr.mxu0 0.0
        %1087 = vmatpush2.msra.mxu0 0.0
        %1088 = vmatprep.subr.mxu0 0.0
        %1089 = vmatpush2.msra.mxu0 0.0
        %1090 = vmatprep.subr.mxu0 0.0
        %1091 = vmatpush2.msra.mxu0 0.0
        %1092 = vmatprep.subr.mxu0 0.0
        %1093 = vmatpush2.msra.mxu0 0.0
        %1094 = vmatprep.subr.mxu0 0.0
        %1095 = vmatpush2.msra.mxu0 0.0
        %1096 = vmatprep.subr.mxu0 0.0
        %1097 = vmatpush2.msra.mxu0 0.0
        %1098 = vmatprep.subr.mxu0 0.0
        %1099 = vmatpush2.msra.mxu0 0.0
        %1100 = vmatprep.mubr.f32.mxu0 0.0
        %1101 = vmatmul.mubr.f32.gmra.mxu0 %v1001
        %v1102 = vpop.f32.mrf.mxu0
        %v1103 = vadd.f32 0.0, %v1102
        %v1104 = vpop.f32.mrf.mxu0
        %1105 = vdwg.mxu0
        %1106 = vmatprep.subr.mxu0 0.0
        %1107 = vmatpush1.msra.mxu0 %v1019
        %1108 = vmatprep.subr.mxu0 0.0
        %1109 = vmatpush1.msra.mxu0 %v1018
        %1110 = vmatprep.subr.mxu0 0.0
        %1111 = vmatpush1.msra.mxu0 %v1017
        %1112 = vmatprep.subr.mxu0 0.0
        %1113 = vmatpush1.msra.mxu0 %v1016
        %1114 = vmatprep.subr.mxu0 0.0
        %1115 = vmatpush1.msra.mxu0 %v1015
        %1116 = vmatprep.subr.mxu0 0.0
        %1117 = vmatpush1.msra.mxu0 %v1014
        %1118 = vmatprep.subr.mxu0 0.0
        %1119 = vmatpush1.msra.mxu0 %v1013
        %1120 = vmatprep.subr.mxu0 0.0
        %1121 = vmatpush1.msra.mxu0 %v1012
        %1122 = vmatprep.subr.mxu0 0.0
        %1123 = vmatpush1.msra.mxu0 %v1011
        %1124 = vmatprep.subr.mxu0 0.0
        %1125 = vmatpush1.msra.mxu0 %v1010
        %1126 = vmatprep.subr.mxu0 0.0
        %1127 = vmatpush1.msra.mxu0 %v1009
        %1128 = vmatprep.subr.mxu0 0.0
        %1129 = vmatpush1.msra.mxu0 %v1008
        %1130 = vmatprep.subr.mxu0 0.0
        %1131 = vmatpush1.msra.mxu0 %v1007
        %1132 = vmatprep.subr.mxu0 0.0
        %1133 = vmatpush1.msra.mxu0 %v1006
        %1134 = vmatprep.subr.mxu0 0.0
        %1135 = vmatpush1.msra.mxu0 %v1005
        %1136 = vmatprep.subr.mxu0 0.0
        %1137 = vmatpush1.msra.mxu0 %v1004
        %1138 = vmatprep.subr.mxu0 0.0
        %1139 = vmatpush2.msra.mxu0 0.0
        %1140 = vmatprep.subr.mxu0 0.0
        %1141 = vmatpush2.msra.mxu0 0.0
        %1142 = vmatprep.subr.mxu0 0.0
        %1143 = vmatpush2.msra.mxu0 0.0
        %1144 = vmatprep.subr.mxu0 0.0
        %1145 = vmatpush2.msra.mxu0 0.0
        %1146 = vmatprep.subr.mxu0 0.0
        %1147 = vmatpush2.msra.mxu0 0.0
        %1148 = vmatprep.subr.mxu0 0.0
        %1149 = vmatpush2.msra.mxu0 0.0
        %1150 = vmatprep.subr.mxu0 0.0
        %1151 = vmatpush2.msra.mxu0 0.0
        %1152 = vmatprep.subr.mxu0 0.0
        %1153 = vmatpush2.msra.mxu0 0.0
        %1154 = vmatprep.subr.mxu0 0.0
        %1155 = vmatpush2.msra.mxu0 0.0
        %1156 = vmatprep.subr.mxu0 0.0
        %1157 = vmatpush2.msra.mxu0 0.0
        %1158 = vmatprep.subr.mxu0 0.0
        %1159 = vmatpush2.msra.mxu0 0.0
        %1160 = vmatprep.subr.mxu0 0.0
        %1161 = vmatpush2.msra.mxu0 0.0
        %1162 = vmatprep.subr.mxu0 0.0
        %1163 = vmatpush2.msra.mxu0 0.0
        %1164 = vmatprep.subr.mxu0 0.0
        %1165 = vmatpush2.msra.mxu0 0.0
        %1166 = vmatprep.subr.mxu0 0.0
        %1167 = vmatpush2.msra.mxu0 0.0
        %1168 = vmatprep.subr.mxu0 0.0
        %1169 = vmatpush2.msra.mxu0 0.0
        %1170 = vmatprep.mubr.f32.mxu0 0.0
        %1171 = vmatmul.mubr.f32.gmra.mxu0 %v554
        %v1172 = vpop.f32.mrf.mxu0
        %v1173 = vadd.f32 %v1103, %v1172
        %v1174 = vpop.f32.mrf.mxu0
        %1175 = vdwg.mxu0
        %v1176 = vld [vmem:[%s10] sm:$0x1]
        %v1178 = vlaneseq
        %v1179 = vshrl.u32 %v1178, 7
        %v1180 = vsub.s32 0, %v1179
        %v1181 = vrot.slane %v1176, %v1180
        %v1183 = vadd.f32 %v1173, %v1181
        %1184 = vst [vmem:[%s553] sm:$0xff] %v1183
        %s1185 = sand.u32 %s303, 1
        %s1186 = scalar_lea.sflag [#allocation4], %s1185
        %s1187 = sand.u32 %s303, 1
        %s1188 = smul.addr %s1187, 8
        %s1189 = scalar_lea.vmem [#allocation14], %s1188
        // Predicated region
        $region93: #{tpu_custom_call.1} parent=63 // pred_check
          %p1190 = pneg %p313
        $region94: #{tpu_custom_call.1} parent=63 // pred_check_branch
          %1192 = sbr.rel (%p1190) target = $region96
        $region95: #{tpu_custom_call.1} parent=63 // pred_region
          %s1194 = ssub.s32 128, 128
          %1195 = vsyncadd %s1186, %s1194
          %s1196 = sadd.s32 %s38, %s37
          %s1197 = smul.addr %s1196, 128
          %s1198 = scalar_lea.hbm %s11, %s1197
          %s1200 = sshll.u32 %s1189, 4
          %s1201 = int_to_ptr.vmem [resolvable:$true] %s1200
          %1203 = dma.vmem_to_hbm [thread:$0]  %s1201, 128, %s1198, %s1186
        $region96: #{tpu_custom_call.1} parent=63 // pred_fallthru
          _
      $region64: #{tpu_custom_call.1} parent=5 // pred_fallthru
        _
      %p1204 = scmp.le.s32.totalorder 2, %s28
      // Predicated region
      $region97: #{tpu_custom_call.1} parent=5 // pred_check
        %p1205 = pneg %p1204
      $region98: #{tpu_custom_call.1} parent=5 // pred_check_branch
        %1207 = sbr.rel (%p1205) target = $region100
      $region99: #{tpu_custom_call.1} parent=5 // pred_region
        %s1208 = ssub.s32 %s28, 2
        // Predicated region
        $region101: #{tpu_custom_call.1} parent=99 // pred_check
          %p1209 = pneg %p319
        $region102: #{tpu_custom_call.1} parent=99 // pred_check_branch
          %1211 = sbr.rel (%p1209) target = $region104
        $region103: #{tpu_custom_call.1} parent=99 // pred_region
          %s1212 = sand.u32 %s304, 1
          %s1213 = scalar_lea.sflag [#allocation4], %s1212
          %s1214 = sand.u32 %s304, 1
          %s1215 = smul.addr %s1214, 8
          %s1216 = scalar_lea.vmem [#allocation14], %s1215
          %1217 = dma.done %s1213, 128
        $region104: #{tpu_custom_call.1} parent=99 // pred_fallthru
          _
      $region100: #{tpu_custom_call.1} parent=5 // pred_fallthru
        _
    $region6: #{tpu_custom_call.1} parent=1 // loop_footer
      %s32 = sadd.s32 1, %s28
    $region7: #{tpu_custom_call.1} parent=1 // loop_footer_branch
      %27 = sbr.rel target = $region3
    $region8: #{tpu_custom_call.1} parent=1 // loop_exit
      _
    %1218 = vsyncpa [#allocation3], 1
    %s1219 = scalar_lea.sflag [#allocation3], 1
    %1220 = vsyncpa %s1219, 1
    %1221 = vsyncpa [#allocation6], 1
    %s1222 = scalar_lea.sflag [#allocation6], 1
    %1223 = vsyncpa %s1222, 1
    %1224 = vsyncpa [#allocation9], 1
    %1225 = vsyncpa [#allocation12], 1
    %1226 = vsyncpa [#allocation4], 1
    %s1227 = scalar_lea.sflag [#allocation4], 1
    %1228 = vsyncpa %s1227, 1

</llo_original>
